<compile_context>
chip_gen: v7x
topology: tpu7x:2x2x1
jax: 0.10.0
libtpu: 0.0.40
codegen_flags: <defaults>
</compile_context>

<pallas_src>
import functools

import numpy as np
import jax
import jax.numpy as jnp
from jax import lax
from jax.experimental import pallas as pl
from jax.experimental.pallas import tpu as pltpu

# ----------------------------------------------------------------------------
# Model configuration (mirrors Conditional_Net(layer_specs, activation=ReLU))
#   layer_specs = [(7, 32, True), (32, 32, True), (32, 8)]
# ----------------------------------------------------------------------------
ARM_DIM     = 8
HALF        = ARM_DIM // 2             # const half = altered half = 4
COND_IN_DIM = HALF + 2 + 1             # const_arm(4) + car_pose(2) + c(1) = 7
HIDDEN      = 32
OUT_DIM     = ARM_DIM                  # chunk(2) -> s, t each of size HALF
NOISE_SCALE = 0.1
NUM_LAYERS  = 3


# ----------------------------------------------------------------------------
# Static permutation -> constant 0/1 selection matrices
#   permuted_arm = const_half @ Pc + new_altered_half @ Pa
# ----------------------------------------------------------------------------
def _perm_selection_mats(perm):
    pc = np.zeros((HALF, ARM_DIM), np.float32)
    pa = np.zeros((HALF, ARM_DIM), np.float32)
    for k, p in enumerate(np.asarray(perm).astype(int)):
        if p < HALF:
            pc[p, k] = 1.0
        else:
            pa[p - HALF, k] = 1.0
    return pc, pa


# ----------------------------------------------------------------------------
# Fused Pallas kernel: num_layers x (Coupling_Layer + Permute_Layer)
# ----------------------------------------------------------------------------
def _flow_kernel(const_ref, alt_ref, ctx_ref, noise_ref,
                 pc_ref, pa_ref,
                 w1c_ref, w1x_ref, b1_ref, w2_ref, b2_ref, w3s_ref, w3t_ref,
                 arm_out_ref, ld_out_ref,
                 *, num_layers):
    const = const_ref[...]              # (1, HALF)      current const half
    alt   = alt_ref[...]                # (1, HALF)      current altered half
    ctx   = ctx_ref[...]                # (1, 3)         [car_x, car_y, c]
    noise = noise_ref[...]              # (num_layers, COND_IN_DIM)
    pcs   = pc_ref[...]                 # (num_layers, HALF, ARM_DIM)
    pas   = pa_ref[...]                 # (num_layers, HALF, ARM_DIM)

    w1c = w1c_ref[...]                  # (HALF, HIDDEN)   W1 rows for const feats
    w1x = w1x_ref[...]                  # (3, HIDDEN)      W1 rows for [x, y, c]
    b1  = b1_ref[...]                   # (1, HIDDEN)
    w2  = w2_ref[...]                   # (HIDDEN, HIDDEN)
    b2  = b2_ref[...]                   # (1, HIDDEN)
    w3s = w3s_ref[...]                  # (HIDDEN, HALF)   -> s
    w3t = w3t_ref[...]                  # (HIDDEN, HALF)   -> t

    inv_n    = jnp.float32(1.0 / COND_IN_DIM)
    inv_nm1  = jnp.float32(1.0 / (COND_IN_DIM - 1))
    inv_half = jnp.float32(1.0 / HALF)

    log_det = jnp.zeros((1, 1), jnp.float32)
    arm_row = jnp.zeros((1, ARM_DIM), jnp.float32)

    # Statically unrolled over layers; all state lives in vector registers.
    for i in range(num_layers):
        nz = noise[i:i + 1, :]                          # (1, COND_IN_DIM)
        xc = const + nz[:, :HALF]                       # noisy const-arm features
        xx = ctx   + nz[:, HALF:]                       # noisy [car_x, car_y, c]

        # (x - mean(x)) / std(x) over the virtual 7-feature conditional input
        # (Bessel-corrected std, matching torch.std; no eps as in reference).
        mean = (jnp.sum(xc, axis=-1, keepdims=True)
                + jnp.sum(xx, axis=-1, keepdims=True)) * inv_n
        xc_c = xc - mean
        xx_c = xx - mean
        var = (jnp.sum(xc_c * xc_c, axis=-1, keepdims=True)
               + jnp.sum(xx_c * xx_c, axis=-1, keepdims=True)) * inv_nm1
        inv_std = lax.rsqrt(var)
        xc_n = xc_c * inv_std
        xx_n = xx_c * inv_std

        # Conditional_Net MLP:  x @ W1 == xc @ W1[:4] + xx @ W1[4:]
        h = (jnp.dot(xc_n, w1c, preferred_element_type=jnp.float32)
             + jnp.dot(xx_n, w1x, preferred_element_type=jnp.float32) + b1)
        h = jnp.maximum(h, 0.0)
        h = jnp.dot(h, w2, preferred_element_type=jnp.float32) + b2
        h = jnp.maximum(h, 0.0)
        s = jnp.clip(jnp.dot(h, w3s, preferred_element_type=jnp.float32),
                     -10.0, 10.0)
        t = jnp.clip(jnp.dot(h, w3t, preferred_element_type=jnp.float32),
                     -10.0, 10.0)

        # Affine coupling + log-det contribution mean(log(|s| + 1e-9)).
        new_alt = alt * jnp.exp(s) + t
        log_det = log_det + jnp.sum(jnp.log(jnp.abs(s) + 1e-9),
                                    axis=-1, keepdims=True) * inv_half

        # Permute_Layer (static): permuted[k] = concat(const, new_alt)[perm[k]]
        arm_row = (jnp.dot(const, pcs[i], preferred_element_type=jnp.float32)
                   + jnp.dot(new_alt, pas[i], preferred_element_type=jnp.float32))
        const = arm_row[:, :HALF]
        alt   = arm_row[:, HALF:]

    arm_out_ref[...] = arm_row                          # (1, ARM_DIM), one store
    ld_out_ref[...]  = log_det                          # (1, 1)


# ----------------------------------------------------------------------------
# Normalizing_Flow_Net.forward (single fused pallas_call)
# ----------------------------------------------------------------------------
def init_conditional_net(key):
    """Kaiming-normal (fan_in, gain=sqrt(2)) weights, zero biases."""
    k1, k2, k3 = jax.random.split(key, 3)
    w1 = jax.random.normal(k1, (COND_IN_DIM, HIDDEN), jnp.float32) * np.sqrt(2.0 / COND_IN_DIM)
    b1 = jnp.zeros((1, HIDDEN), jnp.float32)
    w2 = jax.random.normal(k2, (HIDDEN, HIDDEN), jnp.float32) * np.sqrt(2.0 / HIDDEN)
    b2 = jnp.zeros((1, HIDDEN), jnp.float32)
    w3 = jax.random.normal(k3, (HIDDEN, OUT_DIM), jnp.float32) * np.sqrt(2.0 / HIDDEN)
    return (w1, b1, w2, b2, w3)


def normalizing_flow_forward(arm_solutions, car_x, car_y, c, permute_seed,
                             params, noise_key,
                             noise_scale=NOISE_SCALE, num_layers=NUM_LAYERS):
    """Returns (new_arm (ARM_DIM,), log_det_jacobian scalar)."""
    w1, b1, w2, b2, w3 = params

    # numpy-seeded Permute_Layer permutations -> static at trace time.
    sel = [_perm_selection_mats(
               np.random.default_rng(seed=permute_seed + i).permutation(ARM_DIM))
           for i in range(num_layers)]
    pc_all = jnp.asarray(np.stack([m[0] for m in sel]))   # (L, HALF, ARM_DIM)
    pa_all = jnp.asarray(np.stack([m[1] for m in sel]))   # (L, HALF, ARM_DIM)

    arm = arm_solutions.astype(jnp.float32)
    const0 = arm[:HALF][None, :]
    alt0   = arm[HALF:][None, :]
    ctx    = jnp.array([[car_x, car_y, c]], jnp.float32)
    # One RNG call for all layers' noise.
    noise = (jax.random.normal(noise_key, (num_layers, COND_IN_DIM), jnp.float32)
             * noise_scale)

    args = (const0, alt0, ctx, noise, pc_all, pa_all,
            w1[:HALF, :], w1[HALF:, :], b1, w2, b2,
            w3[:, :HALF], w3[:, HALF:])

    kernel = functools.partial(_flow_kernel, num_layers=num_layers)
    vmem = pltpu.MemorySpace.VMEM
    arm_out, ld = pl.pallas_call(
        kernel,
        in_specs=[pl.BlockSpec(memory_space=vmem)] * len(args),
        out_specs=(pl.BlockSpec(memory_space=vmem),
                   pl.BlockSpec(memory_space=vmem)),
        out_shape=(jax.ShapeDtypeStruct((1, ARM_DIM), jnp.float32),
                   jax.ShapeDtypeStruct((1, 1), jnp.float32)),
    )(*args)
    return arm_out[0], ld[0, 0]


# ----------------------------------------------------------------------------
# Pure-JAX reference (same math, no Pallas) -- used only as a sanity check.
# ----------------------------------------------------------------------------
def _reference_forward(arm_solutions, car_x, car_y, c, permute_seed,
                       params, noise_key,
                       noise_scale=NOISE_SCALE, num_layers=NUM_LAYERS):
    w1, b1, w2, b2, w3 = params
    arm = arm_solutions.astype(jnp.float32)
    ctx = jnp.array([car_x, car_y, c], jnp.float32)
    noise = (jax.random.normal(noise_key, (num_layers, COND_IN_DIM), jnp.float32)
             * noise_scale)
    ld = jnp.zeros((), jnp.float32)
    for i in range(num_layers):
        const, alt = arm[:HALF], arm[HALF:]
        x = jnp.concatenate([const, ctx]) + noise[i]
        x = (x - x.mean()) / jnp.std(x, ddof=1)
        h = jnp.maximum(x @ w1 + b1[0], 0.0)
        h = jnp.maximum(h @ w2 + b2[0], 0.0)
        out = h @ w3
        s = jnp.clip(out[:HALF], -10.0, 10.0)
        t = jnp.clip(out[HALF:], -10.0, 10.0)
        new_alt = alt * jnp.exp(s) + t
        ld = ld + jnp.mean(jnp.log(jnp.abs(s) + 1e-9))
        arm = jnp.concatenate([const, new_alt])
        perm = np.random.default_rng(seed=permute_seed + i).permutation(ARM_DIM)
        arm = arm[perm]
    return arm, ld


# ----------------------------------------------------------------------------
if __name__ == "__main__":
    key = jax.random.PRNGKey(0)
    k_params, k_arm, k_noise = jax.random.split(key, 3)

    params = init_conditional_net(k_params)
    arm = jax.random.normal(k_arm, (ARM_DIM,), jnp.float32)
    car_x, car_y = 0.5, -0.25
    c = 0.3
    permute_seed = 42

    fwd = jax.jit(lambda a, nk: normalizing_flow_forward(
        a, car_x, car_y, c, permute_seed, params, nk))

    new_arm, log_det = fwd(arm, k_noise)
    jax.block_until_ready((new_arm, log_det))

    assert new_arm.shape == (ARM_DIM,)
    assert np.isfinite(np.asarray(new_arm)).all()
    assert np.isfinite(float(log_det))

    # Sanity-check the fused kernel against the plain-JAX reference.
    ref_arm, ref_ld = _reference_forward(arm, car_x, car_y, c, permute_seed,
                                         params, k_noise)
    np.testing.assert_allclose(np.asarray(new_arm), np.asarray(ref_arm),
                               rtol=2e-2, atol=2e-2)
    assert abs(float(log_det) - float(ref_ld)) < 1.0

    # TODO(synk): for throughput-oriented use, add a batch dimension (B arm
    # solutions) with a tiled BlockSpec on B and a "parallel" grid axis.
    print("KERNEL_OK")
</pallas_src>

<mosaic_0001>
module attributes {stable_mosaic.version = 11 : i64} {
  func.func @_flow_kernel(%arg0: memref<1x4xf32, #tpu.memory_space<vmem>>, %arg1: memref<1x4xf32, #tpu.memory_space<vmem>>, %arg2: memref<1x3xf32, #tpu.memory_space<vmem>>, %arg3: memref<3x7xf32, #tpu.memory_space<vmem>>, %arg4: memref<3x4x8xf32, #tpu.memory_space<vmem>>, %arg5: memref<3x4x8xf32, #tpu.memory_space<vmem>>, %arg6: memref<4x32xf32, #tpu.memory_space<vmem>>, %arg7: memref<3x32xf32, #tpu.memory_space<vmem>>, %arg8: memref<1x32xf32, #tpu.memory_space<vmem>>, %arg9: memref<32x32xf32, #tpu.memory_space<vmem>>, %arg10: memref<1x32xf32, #tpu.memory_space<vmem>>, %arg11: memref<32x4xf32, #tpu.memory_space<vmem>>, %arg12: memref<32x4xf32, #tpu.memory_space<vmem>>, %arg13: memref<1x8xf32, #tpu.memory_space<vmem>>, %arg14: memref<1x1xf32, #tpu.memory_space<vmem>>) attributes {dimension_semantics = [], scalar_prefetch = 0 : i64, scratch_operands = 0 : i64, tpu.core_type = #tpu.core_type<tc>} {
    %c0 = arith.constant 0 : index
    %c0_0 = arith.constant 0 : index
    %0 = vector.load %arg0[%c0, %c0_0] : memref<1x4xf32, #tpu.memory_space<vmem>>, vector<1x4xf32>
    %c0_1 = arith.constant 0 : index
    %c0_2 = arith.constant 0 : index
    %1 = vector.load %arg1[%c0_1, %c0_2] : memref<1x4xf32, #tpu.memory_space<vmem>>, vector<1x4xf32>
    %c0_3 = arith.constant 0 : index
    %c0_4 = arith.constant 0 : index
    %2 = vector.load %arg2[%c0_3, %c0_4] : memref<1x3xf32, #tpu.memory_space<vmem>>, vector<1x3xf32>
    %c0_5 = arith.constant 0 : index
    %c0_6 = arith.constant 0 : index
    %3 = vector.load %arg3[%c0_5, %c0_6] : memref<3x7xf32, #tpu.memory_space<vmem>>, vector<3x7xf32>
    %c0_7 = arith.constant 0 : index
    %c0_8 = arith.constant 0 : index
    %c0_9 = arith.constant 0 : index
    %4 = vector.load %arg4[%c0_7, %c0_8, %c0_9] : memref<3x4x8xf32, #tpu.memory_space<vmem>>, vector<3x4x8xf32>
    %c0_10 = arith.constant 0 : index
    %c0_11 = arith.constant 0 : index
    %c0_12 = arith.constant 0 : index
    %5 = vector.load %arg5[%c0_10, %c0_11, %c0_12] : memref<3x4x8xf32, #tpu.memory_space<vmem>>, vector<3x4x8xf32>
    %c0_13 = arith.constant 0 : index
    %c0_14 = arith.constant 0 : index
    %6 = vector.load %arg6[%c0_13, %c0_14] : memref<4x32xf32, #tpu.memory_space<vmem>>, vector<4x32xf32>
    %c0_15 = arith.constant 0 : index
    %c0_16 = arith.constant 0 : index
    %7 = vector.load %arg7[%c0_15, %c0_16] : memref<3x32xf32, #tpu.memory_space<vmem>>, vector<3x32xf32>
    %c0_17 = arith.constant 0 : index
    %c0_18 = arith.constant 0 : index
    %8 = vector.load %arg8[%c0_17, %c0_18] : memref<1x32xf32, #tpu.memory_space<vmem>>, vector<1x32xf32>
    %c0_19 = arith.constant 0 : index
    %c0_20 = arith.constant 0 : index
    %9 = vector.load %arg9[%c0_19, %c0_20] : memref<32x32xf32, #tpu.memory_space<vmem>>, vector<32x32xf32>
    %c0_21 = arith.constant 0 : index
    %c0_22 = arith.constant 0 : index
    %10 = vector.load %arg10[%c0_21, %c0_22] : memref<1x32xf32, #tpu.memory_space<vmem>>, vector<1x32xf32>
    %c0_23 = arith.constant 0 : index
    %c0_24 = arith.constant 0 : index
    %11 = vector.load %arg11[%c0_23, %c0_24] : memref<32x4xf32, #tpu.memory_space<vmem>>, vector<32x4xf32>
    %c0_25 = arith.constant 0 : index
    %c0_26 = arith.constant 0 : index
    %12 = vector.load %arg12[%c0_25, %c0_26] : memref<32x4xf32, #tpu.memory_space<vmem>>, vector<32x4xf32>
    %cst = arith.constant 0.000000e+00 : f32
    %13 = vector.broadcast %cst : f32 to vector<1x1xf32>
    %14 = vector.extract_strided_slice %3 {offsets = [0, 0], sizes = [1, 7], strides = [1, 1]} : vector<3x7xf32> to vector<1x7xf32>
    %15 = vector.extract_strided_slice %14 {offsets = [0, 0], sizes = [1, 4], strides = [1, 1]} : vector<1x7xf32> to vector<1x4xf32>
    %16 = arith.addf %0, %15 : vector<1x4xf32>
    %17 = vector.extract_strided_slice %14 {offsets = [0, 4], sizes = [1, 3], strides = [1, 1]} : vector<1x7xf32> to vector<1x3xf32>
    %18 = arith.addf %2, %17 : vector<1x3xf32>
    %cst_27 = arith.constant dense<0.000000e+00> : vector<1xf32>
    %19 = vector.multi_reduction <add>, %16, %cst_27 [1] : vector<1x4xf32> to vector<1xf32>
    %20 = vector.shape_cast %19 : vector<1xf32> to vector<1x1xf32>
    %cst_28 = arith.constant dense<0.000000e+00> : vector<1xf32>
    %21 = vector.multi_reduction <add>, %18, %cst_28 [1] : vector<1x3xf32> to vector<1xf32>
    %22 = vector.shape_cast %21 : vector<1xf32> to vector<1x1xf32>
    %23 = arith.addf %20, %22 : vector<1x1xf32>
    %cst_29 = arith.constant 0.142857149 : f32
    %24 = vector.broadcast %cst_29 : f32 to vector<1x1xf32>
    %25 = arith.mulf %23, %24 : vector<1x1xf32>
    %26 = vector.broadcast %25 : vector<1x1xf32> to vector<1x4xf32>
    %27 = arith.subf %16, %26 : vector<1x4xf32>
    %28 = vector.broadcast %25 : vector<1x1xf32> to vector<1x3xf32>
    %29 = arith.subf %18, %28 : vector<1x3xf32>
    %30 = arith.mulf %27, %27 : vector<1x4xf32>
    %cst_30 = arith.constant dense<0.000000e+00> : vector<1xf32>
    %31 = vector.multi_reduction <add>, %30, %cst_30 [1] : vector<1x4xf32> to vector<1xf32>
    %32 = vector.shape_cast %31 : vector<1xf32> to vector<1x1xf32>
    %33 = arith.mulf %29, %29 : vector<1x3xf32>
    %cst_31 = arith.constant dense<0.000000e+00> : vector<1xf32>
    %34 = vector.multi_reduction <add>, %33, %cst_31 [1] : vector<1x3xf32> to vector<1xf32>
    %35 = vector.shape_cast %34 : vector<1xf32> to vector<1x1xf32>
    %36 = arith.addf %32, %35 : vector<1x1xf32>
    %cst_32 = arith.constant 0.166666672 : f32
    %37 = vector.broadcast %cst_32 : f32 to vector<1x1xf32>
    %38 = arith.mulf %36, %37 : vector<1x1xf32>
    %39 = math.rsqrt %38 : vector<1x1xf32>
    %40 = vector.broadcast %39 : vector<1x1xf32> to vector<1x4xf32>
    %41 = arith.mulf %27, %40 : vector<1x4xf32>
    %42 = vector.broadcast %39 : vector<1x1xf32> to vector<1x3xf32>
    %43 = arith.mulf %29, %42 : vector<1x3xf32>
    %cst_33 = arith.constant dense<0.000000e+00> : vector<1x32xf32>
    %44 = tpu.matmul %41, %6, %cst_33 {dimension_numbers = #tpu.dot_dimension_numbers<[1], [0], [0], [1], [0, 0, 1, 1], [], []>} : vector<1x4xf32>, vector<4x32xf32>, vector<1x32xf32> -> vector<1x32xf32>
    %cst_34 = arith.constant dense<0.000000e+00> : vector<1x32xf32>
    %45 = tpu.matmul %43, %7, %cst_34 {dimension_numbers = #tpu.dot_dimension_numbers<[1], [0], [0], [1], [0, 0, 1, 1], [], []>} : vector<1x3xf32>, vector<3x32xf32>, vector<1x32xf32> -> vector<1x32xf32>
    %46 = arith.addf %44, %45 : vector<1x32xf32>
    %47 = arith.addf %46, %8 : vector<1x32xf32>
    %cst_35 = arith.constant 0.000000e+00 : f32
    %48 = vector.broadcast %cst_35 : f32 to vector<1x32xf32>
    %49 = arith.maximumf %47, %48 : vector<1x32xf32>
    %cst_36 = arith.constant dense<0.000000e+00> : vector<1x32xf32>
    %50 = tpu.matmul %49, %9, %cst_36 {dimension_numbers = #tpu.dot_dimension_numbers<[1], [0], [0], [1], [0, 0, 1, 1], [], []>} : vector<1x32xf32>, vector<32x32xf32>, vector<1x32xf32> -> vector<1x32xf32>
    %51 = arith.addf %50, %10 : vector<1x32xf32>
    %cst_37 = arith.constant 0.000000e+00 : f32
    %52 = vector.broadcast %cst_37 : f32 to vector<1x32xf32>
    %53 = arith.maximumf %51, %52 : vector<1x32xf32>
    %cst_38 = arith.constant dense<0.000000e+00> : vector<1x4xf32>
    %54 = tpu.matmul %53, %11, %cst_38 {dimension_numbers = #tpu.dot_dimension_numbers<[1], [0], [0], [1], [0, 0, 1, 1], [], []>} : vector<1x32xf32>, vector<32x4xf32>, vector<1x4xf32> -> vector<1x4xf32>
    %cst_39 = arith.constant -1.000000e+01 : f32
    %cst_40 = arith.constant 1.000000e+01 : f32
    %55 = vector.broadcast %cst_39 : f32 to vector<1x4xf32>
    %56 = arith.maximumf %55, %54 : vector<1x4xf32>
    %57 = vector.broadcast %cst_40 : f32 to vector<1x4xf32>
    %58 = arith.minimumf %57, %56 : vector<1x4xf32>
    %cst_41 = arith.constant dense<0.000000e+00> : vector<1x4xf32>
    %59 = tpu.matmul %53, %12, %cst_41 {dimension_numbers = #tpu.dot_dimension_numbers<[1], [0], [0], [1], [0, 0, 1, 1], [], []>} : vector<1x32xf32>, vector<32x4xf32>, vector<1x4xf32> -> vector<1x4xf32>
    %cst_42 = arith.constant -1.000000e+01 : f32
    %cst_43 = arith.constant 1.000000e+01 : f32
    %60 = vector.broadcast %cst_42 : f32 to vector<1x4xf32>
    %61 = arith.maximumf %60, %59 : vector<1x4xf32>
    %62 = vector.broadcast %cst_43 : f32 to vector<1x4xf32>
    %63 = arith.minimumf %62, %61 : vector<1x4xf32>
    %64 = math.exp %58 : vector<1x4xf32>
    %65 = arith.mulf %1, %64 : vector<1x4xf32>
    %66 = arith.addf %65, %63 : vector<1x4xf32>
    %67 = math.absf %58 : vector<1x4xf32>
    %cst_44 = arith.constant 9.99999971E-10 : f32
    %68 = vector.broadcast %cst_44 : f32 to vector<1x4xf32>
    %69 = arith.addf %67, %68 : vector<1x4xf32>
    %70 = math.log %69 : vector<1x4xf32>
    %cst_45 = arith.constant dense<0.000000e+00> : vector<1xf32>
    %71 = vector.multi_reduction <add>, %70, %cst_45 [1] : vector<1x4xf32> to vector<1xf32>
    %72 = vector.shape_cast %71 : vector<1xf32> to vector<1x1xf32>
    %cst_46 = arith.constant 2.500000e-01 : f32
    %73 = vector.broadcast %cst_46 : f32 to vector<1x1xf32>
    %74 = arith.mulf %72, %73 : vector<1x1xf32>
    %75 = arith.addf %13, %74 : vector<1x1xf32>
    %76 = vector.extract_strided_slice %4 {offsets = [0, 0, 0], sizes = [1, 4, 8], strides = [1, 1, 1]} : vector<3x4x8xf32> to vector<1x4x8xf32>
    %77 = vector.shape_cast %76 : vector<1x4x8xf32> to vector<4x8xf32>
    %cst_47 = arith.constant dense<0.000000e+00> : vector<1x8xf32>
    %78 = tpu.matmul %0, %77, %cst_47 {dimension_numbers = #tpu.dot_dimension_numbers<[1], [0], [0], [1], [0, 0, 1, 1], [], []>} : vector<1x4xf32>, vector<4x8xf32>, vector<1x8xf32> -> vector<1x8xf32>
    %79 = vector.extract_strided_slice %5 {offsets = [0, 0, 0], sizes = [1, 4, 8], strides = [1, 1, 1]} : vector<3x4x8xf32> to vector<1x4x8xf32>
    %80 = vector.shape_cast %79 : vector<1x4x8xf32> to vector<4x8xf32>
    %cst_48 = arith.constant dense<0.000000e+00> : vector<1x8xf32>
    %81 = tpu.matmul %66, %80, %cst_48 {dimension_numbers = #tpu.dot_dimension_numbers<[1], [0], [0], [1], [0, 0, 1, 1], [], []>} : vector<1x4xf32>, vector<4x8xf32>, vector<1x8xf32> -> vector<1x8xf32>
    %82 = arith.addf %78, %81 : vector<1x8xf32>
    %83 = vector.extract_strided_slice %82 {offsets = [0, 0], sizes = [1, 4], strides = [1, 1]} : vector<1x8xf32> to vector<1x4xf32>
    %84 = vector.extract_strided_slice %82 {offsets = [0, 4], sizes = [1, 4], strides = [1, 1]} : vector<1x8xf32> to vector<1x4xf32>
    %85 = vector.extract_strided_slice %3 {offsets = [1, 0], sizes = [1, 7], strides = [1, 1]} : vector<3x7xf32> to vector<1x7xf32>
    %86 = vector.extract_strided_slice %85 {offsets = [0, 0], sizes = [1, 4], strides = [1, 1]} : vector<1x7xf32> to vector<1x4xf32>
    %87 = arith.addf %83, %86 : vector<1x4xf32>
    %88 = vector.extract_strided_slice %85 {offsets = [0, 4], sizes = [1, 3], strides = [1, 1]} : vector<1x7xf32> to vector<1x3xf32>
    %89 = arith.addf %2, %88 : vector<1x3xf32>
    %cst_49 = arith.constant dense<0.000000e+00> : vector<1xf32>
    %90 = vector.multi_reduction <add>, %87, %cst_49 [1] : vector<1x4xf32> to vector<1xf32>
    %91 = vector.shape_cast %90 : vector<1xf32> to vector<1x1xf32>
    %cst_50 = arith.constant dense<0.000000e+00> : vector<1xf32>
    %92 = vector.multi_reduction <add>, %89, %cst_50 [1] : vector<1x3xf32> to vector<1xf32>
    %93 = vector.shape_cast %92 : vector<1xf32> to vector<1x1xf32>
    %94 = arith.addf %91, %93 : vector<1x1xf32>
    %cst_51 = arith.constant 0.142857149 : f32
    %95 = vector.broadcast %cst_51 : f32 to vector<1x1xf32>
    %96 = arith.mulf %94, %95 : vector<1x1xf32>
    %97 = vector.broadcast %96 : vector<1x1xf32> to vector<1x4xf32>
    %98 = arith.subf %87, %97 : vector<1x4xf32>
    %99 = vector.broadcast %96 : vector<1x1xf32> to vector<1x3xf32>
    %100 = arith.subf %89, %99 : vector<1x3xf32>
    %101 = arith.mulf %98, %98 : vector<1x4xf32>
    %cst_52 = arith.constant dense<0.000000e+00> : vector<1xf32>
    %102 = vector.multi_reduction <add>, %101, %cst_52 [1] : vector<1x4xf32> to vector<1xf32>
    %103 = vector.shape_cast %102 : vector<1xf32> to vector<1x1xf32>
    %104 = arith.mulf %100, %100 : vector<1x3xf32>
    %cst_53 = arith.constant dense<0.000000e+00> : vector<1xf32>
    %105 = vector.multi_reduction <add>, %104, %cst_53 [1] : vector<1x3xf32> to vector<1xf32>
    %106 = vector.shape_cast %105 : vector<1xf32> to vector<1x1xf32>
    %107 = arith.addf %103, %106 : vector<1x1xf32>
    %cst_54 = arith.constant 0.166666672 : f32
    %108 = vector.broadcast %cst_54 : f32 to vector<1x1xf32>
    %109 = arith.mulf %107, %108 : vector<1x1xf32>
    %110 = math.rsqrt %109 : vector<1x1xf32>
    %111 = vector.broadcast %110 : vector<1x1xf32> to vector<1x4xf32>
    %112 = arith.mulf %98, %111 : vector<1x4xf32>
    %113 = vector.broadcast %110 : vector<1x1xf32> to vector<1x3xf32>
    %114 = arith.mulf %100, %113 : vector<1x3xf32>
    %cst_55 = arith.constant dense<0.000000e+00> : vector<1x32xf32>
    %115 = tpu.matmul %112, %6, %cst_55 {dimension_numbers = #tpu.dot_dimension_numbers<[1], [0], [0], [1], [0, 0, 1, 1], [], []>} : vector<1x4xf32>, vector<4x32xf32>, vector<1x32xf32> -> vector<1x32xf32>
    %cst_56 = arith.constant dense<0.000000e+00> : vector<1x32xf32>
    %116 = tpu.matmul %114, %7, %cst_56 {dimension_numbers = #tpu.dot_dimension_numbers<[1], [0], [0], [1], [0, 0, 1, 1], [], []>} : vector<1x3xf32>, vector<3x32xf32>, vector<1x32xf32> -> vector<1x32xf32>
    %117 = arith.addf %115, %116 : vector<1x32xf32>
    %118 = arith.addf %117, %8 : vector<1x32xf32>
    %cst_57 = arith.constant 0.000000e+00 : f32
    %119 = vector.broadcast %cst_57 : f32 to vector<1x32xf32>
    %120 = arith.maximumf %118, %119 : vector<1x32xf32>
    %cst_58 = arith.constant dense<0.000000e+00> : vector<1x32xf32>
    %121 = tpu.matmul %120, %9, %cst_58 {dimension_numbers = #tpu.dot_dimension_numbers<[1], [0], [0], [1], [0, 0, 1, 1], [], []>} : vector<1x32xf32>, vector<32x32xf32>, vector<1x32xf32> -> vector<1x32xf32>
    %122 = arith.addf %121, %10 : vector<1x32xf32>
    %cst_59 = arith.constant 0.000000e+00 : f32
    %123 = vector.broadcast %cst_59 : f32 to vector<1x32xf32>
    %124 = arith.maximumf %122, %123 : vector<1x32xf32>
    %cst_60 = arith.constant dense<0.000000e+00> : vector<1x4xf32>
    %125 = tpu.matmul %124, %11, %cst_60 {dimension_numbers = #tpu.dot_dimension_numbers<[1], [0], [0], [1], [0, 0, 1, 1], [], []>} : vector<1x32xf32>, vector<32x4xf32>, vector<1x4xf32> -> vector<1x4xf32>
    %cst_61 = arith.constant -1.000000e+01 : f32
    %cst_62 = arith.constant 1.000000e+01 : f32
    %126 = vector.broadcast %cst_61 : f32 to vector<1x4xf32>
    %127 = arith.maximumf %126, %125 : vector<1x4xf32>
    %128 = vector.broadcast %cst_62 : f32 to vector<1x4xf32>
    %129 = arith.minimumf %128, %127 : vector<1x4xf32>
    %cst_63 = arith.constant dense<0.000000e+00> : vector<1x4xf32>
    %130 = tpu.matmul %124, %12, %cst_63 {dimension_numbers = #tpu.dot_dimension_numbers<[1], [0], [0], [1], [0, 0, 1, 1], [], []>} : vector<1x32xf32>, vector<32x4xf32>, vector<1x4xf32> -> vector<1x4xf32>
    %cst_64 = arith.constant -1.000000e+01 : f32
    %cst_65 = arith.constant 1.000000e+01 : f32
    %131 = vector.broadcast %cst_64 : f32 to vector<1x4xf32>
    %132 = arith.maximumf %131, %130 : vector<1x4xf32>
    %133 = vector.broadcast %cst_65 : f32 to vector<1x4xf32>
    %134 = arith.minimumf %133, %132 : vector<1x4xf32>
    %135 = math.exp %129 : vector<1x4xf32>
    %136 = arith.mulf %84, %135 : vector<1x4xf32>
    %137 = arith.addf %136, %134 : vector<1x4xf32>
    %138 = math.absf %129 : vector<1x4xf32>
    %cst_66 = arith.constant 9.99999971E-10 : f32
    %139 = vector.broadcast %cst_66 : f32 to vector<1x4xf32>
    %140 = arith.addf %138, %139 : vector<1x4xf32>
    %141 = math.log %140 : vector<1x4xf32>
    %cst_67 = arith.constant dense<0.000000e+00> : vector<1xf32>
    %142 = vector.multi_reduction <add>, %141, %cst_67 [1] : vector<1x4xf32> to vector<1xf32>
    %143 = vector.shape_cast %142 : vector<1xf32> to vector<1x1xf32>
    %cst_68 = arith.constant 2.500000e-01 : f32
    %144 = vector.broadcast %cst_68 : f32 to vector<1x1xf32>
    %145 = arith.mulf %143, %144 : vector<1x1xf32>
    %146 = arith.addf %75, %145 : vector<1x1xf32>
    %147 = vector.extract_strided_slice %4 {offsets = [1, 0, 0], sizes = [1, 4, 8], strides = [1, 1, 1]} : vector<3x4x8xf32> to vector<1x4x8xf32>
    %148 = vector.shape_cast %147 : vector<1x4x8xf32> to vector<4x8xf32>
    %cst_69 = arith.constant dense<0.000000e+00> : vector<1x8xf32>
    %149 = tpu.matmul %83, %148, %cst_69 {dimension_numbers = #tpu.dot_dimension_numbers<[1], [0], [0], [1], [0, 0, 1, 1], [], []>} : vector<1x4xf32>, vector<4x8xf32>, vector<1x8xf32> -> vector<1x8xf32>
    %150 = vector.extract_strided_slice %5 {offsets = [1, 0, 0], sizes = [1, 4, 8], strides = [1, 1, 1]} : vector<3x4x8xf32> to vector<1x4x8xf32>
    %151 = vector.shape_cast %150 : vector<1x4x8xf32> to vector<4x8xf32>
    %cst_70 = arith.constant dense<0.000000e+00> : vector<1x8xf32>
    %152 = tpu.matmul %137, %151, %cst_70 {dimension_numbers = #tpu.dot_dimension_numbers<[1], [0], [0], [1], [0, 0, 1, 1], [], []>} : vector<1x4xf32>, vector<4x8xf32>, vector<1x8xf32> -> vector<1x8xf32>
    %153 = arith.addf %149, %152 : vector<1x8xf32>
    %154 = vector.extract_strided_slice %153 {offsets = [0, 0], sizes = [1, 4], strides = [1, 1]} : vector<1x8xf32> to vector<1x4xf32>
    %155 = vector.extract_strided_slice %153 {offsets = [0, 4], sizes = [1, 4], strides = [1, 1]} : vector<1x8xf32> to vector<1x4xf32>
    %156 = vector.extract_strided_slice %3 {offsets = [2, 0], sizes = [1, 7], strides = [1, 1]} : vector<3x7xf32> to vector<1x7xf32>
    %157 = vector.extract_strided_slice %156 {offsets = [0, 0], sizes = [1, 4], strides = [1, 1]} : vector<1x7xf32> to vector<1x4xf32>
    %158 = arith.addf %154, %157 : vector<1x4xf32>
    %159 = vector.extract_strided_slice %156 {offsets = [0, 4], sizes = [1, 3], strides = [1, 1]} : vector<1x7xf32> to vector<1x3xf32>
    %160 = arith.addf %2, %159 : vector<1x3xf32>
    %cst_71 = arith.constant dense<0.000000e+00> : vector<1xf32>
    %161 = vector.multi_reduction <add>, %158, %cst_71 [1] : vector<1x4xf32> to vector<1xf32>
    %162 = vector.shape_cast %161 : vector<1xf32> to vector<1x1xf32>
    %cst_72 = arith.constant dense<0.000000e+00> : vector<1xf32>
    %163 = vector.multi_reduction <add>, %160, %cst_72 [1] : vector<1x3xf32> to vector<1xf32>
    %164 = vector.shape_cast %163 : vector<1xf32> to vector<1x1xf32>
    %165 = arith.addf %162, %164 : vector<1x1xf32>
    %cst_73 = arith.constant 0.142857149 : f32
    %166 = vector.broadcast %cst_73 : f32 to vector<1x1xf32>
    %167 = arith.mulf %165, %166 : vector<1x1xf32>
    %168 = vector.broadcast %167 : vector<1x1xf32> to vector<1x4xf32>
    %169 = arith.subf %158, %168 : vector<1x4xf32>
    %170 = vector.broadcast %167 : vector<1x1xf32> to vector<1x3xf32>
    %171 = arith.subf %160, %170 : vector<1x3xf32>
    %172 = arith.mulf %169, %169 : vector<1x4xf32>
    %cst_74 = arith.constant dense<0.000000e+00> : vector<1xf32>
    %173 = vector.multi_reduction <add>, %172, %cst_74 [1] : vector<1x4xf32> to vector<1xf32>
    %174 = vector.shape_cast %173 : vector<1xf32> to vector<1x1xf32>
    %175 = arith.mulf %171, %171 : vector<1x3xf32>
    %cst_75 = arith.constant dense<0.000000e+00> : vector<1xf32>
    %176 = vector.multi_reduction <add>, %175, %cst_75 [1] : vector<1x3xf32> to vector<1xf32>
    %177 = vector.shape_cast %176 : vector<1xf32> to vector<1x1xf32>
    %178 = arith.addf %174, %177 : vector<1x1xf32>
    %cst_76 = arith.constant 0.166666672 : f32
    %179 = vector.broadcast %cst_76 : f32 to vector<1x1xf32>
    %180 = arith.mulf %178, %179 : vector<1x1xf32>
    %181 = math.rsqrt %180 : vector<1x1xf32>
    %182 = vector.broadcast %181 : vector<1x1xf32> to vector<1x4xf32>
    %183 = arith.mulf %169, %182 : vector<1x4xf32>
    %184 = vector.broadcast %181 : vector<1x1xf32> to vector<1x3xf32>
    %185 = arith.mulf %171, %184 : vector<1x3xf32>
    %cst_77 = arith.constant dense<0.000000e+00> : vector<1x32xf32>
    %186 = tpu.matmul %183, %6, %cst_77 {dimension_numbers = #tpu.dot_dimension_numbers<[1], [0], [0], [1], [0, 0, 1, 1], [], []>} : vector<1x4xf32>, vector<4x32xf32>, vector<1x32xf32> -> vector<1x32xf32>
    %cst_78 = arith.constant dense<0.000000e+00> : vector<1x32xf32>
    %187 = tpu.matmul %185, %7, %cst_78 {dimension_numbers = #tpu.dot_dimension_numbers<[1], [0], [0], [1], [0, 0, 1, 1], [], []>} : vector<1x3xf32>, vector<3x32xf32>, vector<1x32xf32> -> vector<1x32xf32>
    %188 = arith.addf %186, %187 : vector<1x32xf32>
    %189 = arith.addf %188, %8 : vector<1x32xf32>
    %cst_79 = arith.constant 0.000000e+00 : f32
    %190 = vector.broadcast %cst_79 : f32 to vector<1x32xf32>
    %191 = arith.maximumf %189, %190 : vector<1x32xf32>
    %cst_80 = arith.constant dense<0.000000e+00> : vector<1x32xf32>
    %192 = tpu.matmul %191, %9, %cst_80 {dimension_numbers = #tpu.dot_dimension_numbers<[1], [0], [0], [1], [0, 0, 1, 1], [], []>} : vector<1x32xf32>, vector<32x32xf32>, vector<1x32xf32> -> vector<1x32xf32>
    %193 = arith.addf %192, %10 : vector<1x32xf32>
    %cst_81 = arith.constant 0.000000e+00 : f32
    %194 = vector.broadcast %cst_81 : f32 to vector<1x32xf32>
    %195 = arith.maximumf %193, %194 : vector<1x32xf32>
    %cst_82 = arith.constant dense<0.000000e+00> : vector<1x4xf32>
    %196 = tpu.matmul %195, %11, %cst_82 {dimension_numbers = #tpu.dot_dimension_numbers<[1], [0], [0], [1], [0, 0, 1, 1], [], []>} : vector<1x32xf32>, vector<32x4xf32>, vector<1x4xf32> -> vector<1x4xf32>
    %cst_83 = arith.constant -1.000000e+01 : f32
    %cst_84 = arith.constant 1.000000e+01 : f32
    %197 = vector.broadcast %cst_83 : f32 to vector<1x4xf32>
    %198 = arith.maximumf %197, %196 : vector<1x4xf32>
    %199 = vector.broadcast %cst_84 : f32 to vector<1x4xf32>
    %200 = arith.minimumf %199, %198 : vector<1x4xf32>
    %cst_85 = arith.constant dense<0.000000e+00> : vector<1x4xf32>
    %201 = tpu.matmul %195, %12, %cst_85 {dimension_numbers = #tpu.dot_dimension_numbers<[1], [0], [0], [1], [0, 0, 1, 1], [], []>} : vector<1x32xf32>, vector<32x4xf32>, vector<1x4xf32> -> vector<1x4xf32>
    %cst_86 = arith.constant -1.000000e+01 : f32
    %cst_87 = arith.constant 1.000000e+01 : f32
    %202 = vector.broadcast %cst_86 : f32 to vector<1x4xf32>
    %203 = arith.maximumf %202, %201 : vector<1x4xf32>
    %204 = vector.broadcast %cst_87 : f32 to vector<1x4xf32>
    %205 = arith.minimumf %204, %203 : vector<1x4xf32>
    %206 = math.exp %200 : vector<1x4xf32>
    %207 = arith.mulf %155, %206 : vector<1x4xf32>
    %208 = arith.addf %207, %205 : vector<1x4xf32>
    %209 = math.absf %200 : vector<1x4xf32>
    %cst_88 = arith.constant 9.99999971E-10 : f32
    %210 = vector.broadcast %cst_88 : f32 to vector<1x4xf32>
    %211 = arith.addf %209, %210 : vector<1x4xf32>
    %212 = math.log %211 : vector<1x4xf32>
    %cst_89 = arith.constant dense<0.000000e+00> : vector<1xf32>
    %213 = vector.multi_reduction <add>, %212, %cst_89 [1] : vector<1x4xf32> to vector<1xf32>
    %214 = vector.shape_cast %213 : vector<1xf32> to vector<1x1xf32>
    %cst_90 = arith.constant 2.500000e-01 : f32
    %215 = vector.broadcast %cst_90 : f32 to vector<1x1xf32>
    %216 = arith.mulf %214, %215 : vector<1x1xf32>
    %217 = arith.addf %146, %216 : vector<1x1xf32>
    %218 = vector.extract_strided_slice %4 {offsets = [2, 0, 0], sizes = [1, 4, 8], strides = [1, 1, 1]} : vector<3x4x8xf32> to vector<1x4x8xf32>
    %219 = vector.shape_cast %218 : vector<1x4x8xf32> to vector<4x8xf32>
    %cst_91 = arith.constant dense<0.000000e+00> : vector<1x8xf32>
    %220 = tpu.matmul %154, %219, %cst_91 {dimension_numbers = #tpu.dot_dimension_numbers<[1], [0], [0], [1], [0, 0, 1, 1], [], []>} : vector<1x4xf32>, vector<4x8xf32>, vector<1x8xf32> -> vector<1x8xf32>
    %221 = vector.extract_strided_slice %5 {offsets = [2, 0, 0], sizes = [1, 4, 8], strides = [1, 1, 1]} : vector<3x4x8xf32> to vector<1x4x8xf32>
    %222 = vector.shape_cast %221 : vector<1x4x8xf32> to vector<4x8xf32>
    %cst_92 = arith.constant dense<0.000000e+00> : vector<1x8xf32>
    %223 = tpu.matmul %208, %222, %cst_92 {dimension_numbers = #tpu.dot_dimension_numbers<[1], [0], [0], [1], [0, 0, 1, 1], [], []>} : vector<1x4xf32>, vector<4x8xf32>, vector<1x8xf32> -> vector<1x8xf32>
    %224 = arith.addf %220, %223 : vector<1x8xf32>
    %c0_93 = arith.constant 0 : index
    %c0_94 = arith.constant 0 : index
    %225 = vector.load %arg13[%c0_93, %c0_94] : memref<1x8xf32, #tpu.memory_space<vmem>>, vector<1x8xf32>
    tpu.vector_store %arg13[%c0_93, %c0_94], %224 {strides = array<i32>} : memref<1x8xf32, #tpu.memory_space<vmem>>, vector<1x8xf32>,
    %c0_95 = arith.constant 0 : index
    %c0_96 = arith.constant 0 : index
    %226 = vector.load %arg14[%c0_95, %c0_96] : memref<1x1xf32, #tpu.memory_space<vmem>>, vector<1x1xf32>
    tpu.vector_store %arg14[%c0_95, %c0_96], %217 {strides = array<i32>} : memref<1x1xf32, #tpu.memory_space<vmem>>, vector<1x1xf32>,
    return
  }
}

</mosaic_0001>

<llo_original>
// kernel: _lambda_.1
$region0: #{_lambda_.1}
  #allocation0 [shape = 'u32[]', space=smem, size = 0x4, offset = 0x4, fixed_abs, tag = 'smem constant byte address 0x4 - core index']
  #allocation1 [shape = 'u32[144,128]{1,0:T(1,128)}', space=vmem, size = 0x12000, scoped, tag = 'internal scratch']
  %s0 = inlined_call_operand.vmem [shape: f32[1,4], index: 0, kind: input, shape index: {}]
  %s1 = inlined_call_operand.vmem [shape: f32[1,4], index: 1, kind: input, shape index: {}]
  %s2 = inlined_call_operand.vmem [shape: f32[1,3], index: 2, kind: input, shape index: {}]
  %s3 = inlined_call_operand.vmem [shape: f32[3,7], index: 3, kind: input, shape index: {}]
  %s4 = inlined_call_operand.vmem [shape: f32[3,4,8], index: 4, kind: input, shape index: {}]
  %s5 = inlined_call_operand.hbm [shape: f32[3,4,8], index: 5, kind: input, shape index: {}]
  %s6 = inlined_call_operand.vmem [shape: f32[4,32], index: 6, kind: input, shape index: {}]
  %s7 = inlined_call_operand.vmem [shape: f32[3,32], index: 7, kind: input, shape index: {}]
  %s8 = inlined_call_operand.vmem [shape: f32[1,32], index: 8, kind: input, shape index: {}, may-alias: {8,10}]
  %s9 = inlined_call_operand.hbm [shape: f32[32,32], index: 9, kind: input, shape index: {}]
  %s10 = inlined_call_operand.vmem [shape: f32[1,32], index: 10, kind: input, shape index: {}, may-alias: {8,10}]
  %s11 = inlined_call_operand.vmem [shape: f32[32,4], index: 11, kind: input, shape index: {}]
  %s12 = inlined_call_operand.vmem [shape: f32[32,4], index: 12, kind: input, shape index: {}]
  %s13 = inlined_call_operand.hbm [shape: f32[1,8], index: 13, kind: output, shape index: {0}]
  %s14 = inlined_call_operand.hbm [shape: f32[1,1], index: 14, kind: output, shape index: {1}]
  %15 = xla_tuple %s13, %s14
  %s16 = sld [smem:[#allocation0]]
  $region78: #{_lambda_.1} parent=0
    _
  %s18 = ssub.s32 1, %s16
  %s19 = scalar_select 0, %s18, %s16
  $region1: #{_lambda_.1} parent=0
    #allocation2 [shape = 'u8[6144]{0}', space=vmem, size = 0x1800, scoped, tag = 'input window, operand 5, single buffered']
    #allocation3 [shape = 's32[1]{0}', space=sflag, size = 0x4, scoped, tag = 'scoped memory for _lambda_.1']
    #allocation4 [shape = 's32[1]{0}', space=sflag, size = 0x4, scoped, tag = 'scoped memory for _lambda_.1']
    #allocation5 [shape = 'u8[16384]{0}', space=vmem, size = 0x4000, scoped, tag = 'input window, operand 9, single buffered']
    #allocation6 [shape = 's32[1]{0}', space=sflag, size = 0x4, scoped, tag = 'scoped memory for _lambda_.1']
    #allocation7 [shape = 'u8[512]{0}', space=vmem, size = 0x400, scoped, tag = 'output window, operand 0, single buffered']
    #allocation8 [shape = 'u8[512]{0}', space=vmem, size = 0x400, scoped, tag = 'output window, operand 1, single buffered']
    #allocation9 [shape = 's32[1]{0}', space=sflag, size = 0x4, scoped, tag = 'scoped memory for _lambda_.1']
    %20 = vsyncpa [#allocation3], 0
    %21 = vsyncpa [#allocation6], 0
    %22 = vsyncpa [#allocation4], 0
    %23 = vsyncpa [#allocation9], 0
    // Predicated region
    $region2: #{_lambda_.1} parent=1 // pred_check
      _
    $region3: #{_lambda_.1} parent=1 // pred_check_branch
      %25 = sbr.rel (0) target = $region5
    $region4: #{_lambda_.1} parent=1 // pred_region
      _
    $region5: #{_lambda_.1} parent=1 // pred_fallthru
      _
    // Predicated region
    $region6: #{_lambda_.1} parent=1 // pred_check
      _
    $region7: #{_lambda_.1} parent=1 // pred_check_branch
      %27 = sbr.rel (0) target = $region9
    $region8: #{_lambda_.1} parent=1 // pred_region
      _
    $region9: #{_lambda_.1} parent=1 // pred_fallthru
      _
    // Predicated region
    $region10: #{_lambda_.1} parent=1 // pred_check
      _
    $region11: #{_lambda_.1} parent=1 // pred_check_branch
      %29 = sbr.rel (0) target = $region13
    $region12: #{_lambda_.1} parent=1 // pred_region
      _
    $region13: #{_lambda_.1} parent=1 // pred_fallthru
      _
    // Predicated region
    $region14: #{_lambda_.1} parent=1 // pred_check
      _
    $region15: #{_lambda_.1} parent=1 // pred_check_branch
      %31 = sbr.rel (0) target = $region17
    $region16: #{_lambda_.1} parent=1 // pred_region
      _
    $region17: #{_lambda_.1} parent=1 // pred_fallthru
      _
    // Predicated region
    $region18: #{_lambda_.1} parent=1 // pred_check
      _
    $region19: #{_lambda_.1} parent=1 // pred_check_branch
      %33 = sbr.rel (0) target = $region21
    $region20: #{_lambda_.1} parent=1 // pred_region
      _
    $region21: #{_lambda_.1} parent=1 // pred_fallthru
      _
    // Predicated region
    $region22: #{_lambda_.1} parent=1 // pred_check
      _
    $region23: #{_lambda_.1} parent=1 // pred_check_branch
      %35 = sbr.rel (0) target = $region25
    $region24: #{_lambda_.1} parent=1 // pred_region
      %s37 = ssub.s32 192, 192
      %38 = vsyncadd [#allocation3], %s37
      %s39 = sshll.u32 [#allocation2], 4
      %s40 = int_to_ptr.vmem [resolvable:$true] %s39
      %45 = dma.hbm_to_vmem [thread:$0]  %s5, 192, %s40, [#allocation3], 64, 64, 4
    $region25: #{_lambda_.1} parent=1 // pred_fallthru
      _
    // Predicated region
    $region26: #{_lambda_.1} parent=1 // pred_check
      _
    $region27: #{_lambda_.1} parent=1 // pred_check_branch
      %47 = sbr.rel (0) target = $region29
    $region28: #{_lambda_.1} parent=1 // pred_region
      _
    $region29: #{_lambda_.1} parent=1 // pred_fallthru
      _
    // Predicated region
    $region30: #{_lambda_.1} parent=1 // pred_check
      _
    $region31: #{_lambda_.1} parent=1 // pred_check_branch
      %49 = sbr.rel (0) target = $region33
    $region32: #{_lambda_.1} parent=1 // pred_region
      _
    $region33: #{_lambda_.1} parent=1 // pred_fallthru
      _
    // Predicated region
    $region34: #{_lambda_.1} parent=1 // pred_check
      _
    $region35: #{_lambda_.1} parent=1 // pred_check_branch
      %51 = sbr.rel (0) target = $region37
    $region36: #{_lambda_.1} parent=1 // pred_region
      _
    $region37: #{_lambda_.1} parent=1 // pred_fallthru
      _
    // Predicated region
    $region38: #{_lambda_.1} parent=1 // pred_check
      _
    $region39: #{_lambda_.1} parent=1 // pred_check_branch
      %53 = sbr.rel (0) target = $region41
    $region40: #{_lambda_.1} parent=1 // pred_region
      %s55 = ssub.s32 512, 512
      %56 = vsyncadd [#allocation6], %s55
      %s57 = sshll.u32 [#allocation5], 4
      %s58 = int_to_ptr.vmem [resolvable:$true] %s57
      %63 = dma.hbm_to_vmem [thread:$0]  %s9, 512, %s58, [#allocation6], 128, 128, 8
    $region41: #{_lambda_.1} parent=1 // pred_fallthru
      _
    // Predicated region
    $region42: #{_lambda_.1} parent=1 // pred_check
      _
    $region43: #{_lambda_.1} parent=1 // pred_check_branch
      %65 = sbr.rel (0) target = $region45
    $region44: #{_lambda_.1} parent=1 // pred_region
      _
    $region45: #{_lambda_.1} parent=1 // pred_fallthru
      _
    // Predicated region
    $region46: #{_lambda_.1} parent=1 // pred_check
      _
    $region47: #{_lambda_.1} parent=1 // pred_check_branch
      %67 = sbr.rel (0) target = $region49
    $region48: #{_lambda_.1} parent=1 // pred_region
      _
    $region49: #{_lambda_.1} parent=1 // pred_fallthru
      _
    // Predicated region
    $region50: #{_lambda_.1} parent=1 // pred_check
      _
    $region51: #{_lambda_.1} parent=1 // pred_check_branch
      %69 = sbr.rel (0) target = $region53
    $region52: #{_lambda_.1} parent=1 // pred_region
      _
    $region53: #{_lambda_.1} parent=1 // pred_fallthru
      _
    // Predicated region
    $region54: #{_lambda_.1} parent=1 // pred_check
      _
    $region55: #{_lambda_.1} parent=1 // pred_check_branch
      %71 = sbr.rel (0) target = $region57
    $region56: #{_lambda_.1} parent=1 // pred_region
      %72 = dma.done [#allocation3], 192
    $region57: #{_lambda_.1} parent=1 // pred_fallthru
      _
    // Predicated region
    $region58: #{_lambda_.1} parent=1 // pred_check
      _
    $region59: #{_lambda_.1} parent=1 // pred_check_branch
      %74 = sbr.rel (0) target = $region61
    $region60: #{_lambda_.1} parent=1 // pred_region
      %75 = dma.done [#allocation6], 512
    $region61: #{_lambda_.1} parent=1 // pred_fallthru
      _
    %v76 = vld [vmem:[%s0] sm:$0x1]
    %v77 = vld [vmem:[%s1] sm:$0x1]
    %v78 = vld [vmem:[%s2] sm:$0x1]
    %v79 = vld [vmem:[%s3] sm:$0x7]
    %v80 = vld [vmem:[%s4] sm:$0xf]
    %v81 = vld [vmem:[%s4 + $0x4] sm:$0xf]
    %v82 = vld [vmem:[%s4 + $0x8] sm:$0xf]
    %v83 = vld [vmem:[#allocation2] sm:$0xf]
    %v84 = vld [vmem:[#allocation2 + $0x4] sm:$0xf]
    %v85 = vld [vmem:[#allocation2 + $0x8] sm:$0xf]
    %v86 = vld [vmem:[%s6] sm:$0xf]
    %v87 = vld [vmem:[%s7] sm:$0x7]
    %v88 = vld [vmem:[%s8] sm:$0x1]
    %v89 = vld [vmem:[#allocation5] sm:$0xff]
    %v90 = vld [vmem:[#allocation5 + $0x8] sm:$0xff]
    %v91 = vld [vmem:[#allocation5 + $0x10] sm:$0xff]
    %v92 = vld [vmem:[#allocation5 + $0x18] sm:$0xff]
    %v93 = vld [vmem:[%s10] sm:$0x1]
    %v94 = vld [vmem:[%s11] sm:$0xff]
    %v95 = vld [vmem:[%s11 + $0x8] sm:$0xff]
    %v96 = vld [vmem:[%s11 + $0x10] sm:$0xff]
    %v97 = vld [vmem:[%s11 + $0x18] sm:$0xff]
    %v98 = vld [vmem:[%s12] sm:$0xff]
    %v99 = vld [vmem:[%s12 + $0x8] sm:$0xff]
    %v100 = vld [vmem:[%s12 + $0x10] sm:$0xff]
    %v101 = vld [vmem:[%s12 + $0x18] sm:$0xff]
    %v102 = vadd.f32 %v76, %v79
    %v105 = vunpack.c.l.s4 1966171168
    %v106 = vunpack.c.0.s8 %v105
    %v107 = vlaneseq
    %v108 = vshrl.u32 %v107, 7
    %v109 = vsub.s32 %v106, %v108
    %v110 = vrot.slane %v79, %v109
    %v112 = vunpack.c.l.s4 1966171168
    %v113 = vunpack.c.0.s8 %v112
    %v114 = vlaneseq
    %v115 = vshrl.u32 %v114, 7
    %v116 = vsub.s32 %v113, %v115
    %v117 = vrot.slane %v110, %v116
    %118 = vrot.lane.b32.xlu0 %v117, 124
    %v119 = vpop.permute.xlu0 %118
    %v121 = vadd.f32 %v78, %v119
    %vm122 = vcmask 24576
    %v123 = vsel %vm122, %v102, 0.0
    %124 = vadd.xlane.f32.xlu0 %v123
    %v125 = vpop.xlane.xlu0 %124
    %vm126 = vcmask 16384
    %v127 = vsel %vm126, %v121, 0.0
    %128 = vadd.xlane.f32.xlu0 %v127
    %v129 = vpop.xlane.xlu0 %128
    %v130 = vadd.f32 %v125, %v129
    %v131 = vmul.f32 %v130, 0.14285715
    %v132 = vsub.f32 %v102, %v131
    %v133 = vsub.f32 %v121, %v131
    %v134 = vmul.f32 %v132, %v132
    %v135 = vsel %vm122, %v134, 0.0
    %136 = vadd.xlane.f32.xlu0 %v135
    %v137 = vpop.xlane.xlu0 %136
    %v138 = vmul.f32 %v133, %v133
    %v139 = vsel %vm126, %v138, 0.0
    %140 = vadd.xlane.f32.xlu0 %v139
    %v141 = vpop.xlane.xlu0 %140
    %v142 = vadd.f32 %v137, %v141
    %v143 = vmul.f32 %v142, 0.16666667
    %v144 = vrsqrt.pop %v143
    %v145 = vmul.f32 %v132, %v144
    %v146 = vmul.f32 %v133, %v144
    %vm147 = vcmask 23552
    %v149 = vsel %vm147, %v146, 0
    %vm151 = vcmask 1042432
    %v153 = vsel %vm151, %v87, 0
    %155 = vmatprep.subr.mxu0 0.0
    %156 = vmatpush1.msra.mxu0 %v153
    %157 = vmatprep.subr.mxu0 0.0
    %158 = vmatpush1.msra.mxu0 0.0
    %159 = vmatprep.subr.mxu0 0.0
    %160 = vmatpush1.msra.mxu0 0.0
    %161 = vmatprep.subr.mxu0 0.0
    %162 = vmatpush1.msra.mxu0 0.0
    %163 = vmatprep.subr.mxu0 0.0
    %164 = vmatpush1.msra.mxu0 0.0
    %165 = vmatprep.subr.mxu0 0.0
    %166 = vmatpush1.msra.mxu0 0.0
    %167 = vmatprep.subr.mxu0 0.0
    %168 = vmatpush1.msra.mxu0 0.0
    %169 = vmatprep.subr.mxu0 0.0
    %170 = vmatpush1.msra.mxu0 0.0
    %171 = vmatprep.subr.mxu0 0.0
    %172 = vmatpush1.msra.mxu0 0.0
    %173 = vmatprep.subr.mxu0 0.0
    %174 = vmatpush1.msra.mxu0 0.0
    %175 = vmatprep.subr.mxu0 0.0
    %176 = vmatpush1.msra.mxu0 0.0
    %177 = vmatprep.subr.mxu0 0.0
    %178 = vmatpush1.msra.mxu0 0.0
    %179 = vmatprep.subr.mxu0 0.0
    %180 = vmatpush1.msra.mxu0 0.0
    %181 = vmatprep.subr.mxu0 0.0
    %182 = vmatpush1.msra.mxu0 0.0
    %183 = vmatprep.subr.mxu0 0.0
    %184 = vmatpush1.msra.mxu0 0.0
    %185 = vmatprep.subr.mxu0 0.0
    %186 = vmatpush1.msra.mxu0 0.0
    %187 = vmatprep.subr.mxu0 0.0
    %188 = vmatpush1.msra.mxu0 0.0
    %189 = vmatprep.subr.mxu0 0.0
    %190 = vmatpush1.msra.mxu0 0.0
    %191 = vmatprep.subr.mxu0 0.0
    %192 = vmatpush1.msra.mxu0 0.0
    %193 = vmatprep.subr.mxu0 0.0
    %194 = vmatpush1.msra.mxu0 0.0
    %195 = vmatprep.subr.mxu0 0.0
    %196 = vmatpush1.msra.mxu0 0.0
    %197 = vmatprep.subr.mxu0 0.0
    %198 = vmatpush1.msra.mxu0 0.0
    %199 = vmatprep.subr.mxu0 0.0
    %200 = vmatpush1.msra.mxu0 0.0
    %201 = vmatprep.subr.mxu0 0.0
    %202 = vmatpush1.msra.mxu0 0.0
    %203 = vmatprep.subr.mxu0 0.0
    %204 = vmatpush1.msra.mxu0 0.0
    %205 = vmatprep.subr.mxu0 0.0
    %206 = vmatpush1.msra.mxu0 0.0
    %207 = vmatprep.subr.mxu0 0.0
    %208 = vmatpush1.msra.mxu0 0.0
    %209 = vmatprep.subr.mxu0 0.0
    %210 = vmatpush1.msra.mxu0 0.0
    %211 = vmatprep.subr.mxu0 0.0
    %212 = vmatpush1.msra.mxu0 0.0
    %213 = vmatprep.subr.mxu0 0.0
    %214 = vmatpush1.msra.mxu0 0.0
    %215 = vmatprep.subr.mxu0 0.0
    %216 = vmatpush1.msra.mxu0 0.0
    %217 = vmatprep.subr.mxu0 0.0
    %218 = vmatpush1.msra.mxu0 0.0
    %219 = vmatprep.mubr.f32.mxu0 0.0
    %220 = vmatmul.mubr.f32.gmra.mrb[0].mxu0 %v149
    %v221 = vpop.f32.mrb[0].mxu0
    %v222 = vadd.f32 0.0, %v221
    %v223 = vpop.f32.mrb[0].mxu0
    %224 = vdwg.mxu0
    %vm225 = vcmask 31744
    %v227 = vsel %vm225, %v145, 0
    %vm229 = vcmask 1043456
    %v231 = vsel %vm229, %v86, 0
    %233 = vmatprep.subr.mxu0 0.0
    %234 = vmatpush1.msra.mxu0 %v231
    %235 = vmatprep.subr.mxu0 0.0
    %236 = vmatpush1.msra.mxu0 0.0
    %237 = vmatprep.subr.mxu0 0.0
    %238 = vmatpush1.msra.mxu0 0.0
    %239 = vmatprep.subr.mxu0 0.0
    %240 = vmatpush1.msra.mxu0 0.0
    %241 = vmatprep.subr.mxu0 0.0
    %242 = vmatpush1.msra.mxu0 0.0
    %243 = vmatprep.subr.mxu0 0.0
    %244 = vmatpush1.msra.mxu0 0.0
    %245 = vmatprep.subr.mxu0 0.0
    %246 = vmatpush1.msra.mxu0 0.0
    %247 = vmatprep.subr.mxu0 0.0
    %248 = vmatpush1.msra.mxu0 0.0
    %249 = vmatprep.subr.mxu0 0.0
    %250 = vmatpush1.msra.mxu0 0.0
    %251 = vmatprep.subr.mxu0 0.0
    %252 = vmatpush1.msra.mxu0 0.0
    %253 = vmatprep.subr.mxu0 0.0
    %254 = vmatpush1.msra.mxu0 0.0
    %255 = vmatprep.subr.mxu0 0.0
    %256 = vmatpush1.msra.mxu0 0.0
    %257 = vmatprep.subr.mxu0 0.0
    %258 = vmatpush1.msra.mxu0 0.0
    %259 = vmatprep.subr.mxu0 0.0
    %260 = vmatpush1.msra.mxu0 0.0
    %261 = vmatprep.subr.mxu0 0.0
    %262 = vmatpush1.msra.mxu0 0.0
    %263 = vmatprep.subr.mxu0 0.0
    %264 = vmatpush1.msra.mxu0 0.0
    %265 = vmatprep.subr.mxu0 0.0
    %266 = vmatpush1.msra.mxu0 0.0
    %267 = vmatprep.subr.mxu0 0.0
    %268 = vmatpush1.msra.mxu0 0.0
    %269 = vmatprep.subr.mxu0 0.0
    %270 = vmatpush1.msra.mxu0 0.0
    %271 = vmatprep.subr.mxu0 0.0
    %272 = vmatpush1.msra.mxu0 0.0
    %273 = vmatprep.subr.mxu0 0.0
    %274 = vmatpush1.msra.mxu0 0.0
    %275 = vmatprep.subr.mxu0 0.0
    %276 = vmatpush1.msra.mxu0 0.0
    %277 = vmatprep.subr.mxu0 0.0
    %278 = vmatpush1.msra.mxu0 0.0
    %279 = vmatprep.subr.mxu0 0.0
    %280 = vmatpush1.msra.mxu0 0.0
    %281 = vmatprep.subr.mxu0 0.0
    %282 = vmatpush1.msra.mxu0 0.0
    %283 = vmatprep.subr.mxu0 0.0
    %284 = vmatpush1.msra.mxu0 0.0
    %285 = vmatprep.subr.mxu0 0.0
    %286 = vmatpush1.msra.mxu0 0.0
    %287 = vmatprep.subr.mxu0 0.0
    %288 = vmatpush1.msra.mxu0 0.0
    %289 = vmatprep.subr.mxu0 0.0
    %290 = vmatpush1.msra.mxu0 0.0
    %291 = vmatprep.subr.mxu0 0.0
    %292 = vmatpush1.msra.mxu0 0.0
    %293 = vmatprep.subr.mxu0 0.0
    %294 = vmatpush1.msra.mxu0 0.0
    %295 = vmatprep.subr.mxu0 0.0
    %296 = vmatpush1.msra.mxu0 0.0
    %297 = vmatprep.mubr.f32.mxu0 0.0
    %298 = vmatmul.mubr.f32.gmra.mrb[0].mxu0 %v227
    %v299 = vpop.f32.mrb[0].mxu0
    %v300 = vadd.f32 %v222, %v299
    %v301 = vpop.f32.mrb[0].mxu0
    %302 = vdwg.mxu0
    %v303 = vadd.f32 %v300, %v88
    %v304 = vmax.f32 %v303, 0.0
    %vm305 = vcmask 261120
    %v307 = vsel %vm305, %v304, 0
    %309 = vmatprep.subr.mxu0 0.0
    %310 = vmatpush1.msra.mxu0 %v89
    %311 = vmatprep.subr.mxu0 0.0
    %312 = vmatpush1.msra.mxu0 %v90
    %313 = vmatprep.subr.mxu0 0.0
    %314 = vmatpush1.msra.mxu0 %v91
    %315 = vmatprep.subr.mxu0 0.0
    %316 = vmatpush1.msra.mxu0 %v92
    %317 = vmatprep.subr.mxu0 0.0
    %318 = vmatpush1.msra.mxu0 0.0
    %319 = vmatprep.subr.mxu0 0.0
    %320 = vmatpush1.msra.mxu0 0.0
    %321 = vmatprep.subr.mxu0 0.0
    %322 = vmatpush1.msra.mxu0 0.0
    %323 = vmatprep.subr.mxu0 0.0
    %324 = vmatpush1.msra.mxu0 0.0
    %325 = vmatprep.subr.mxu0 0.0
    %326 = vmatpush1.msra.mxu0 0.0
    %327 = vmatprep.subr.mxu0 0.0
    %328 = vmatpush1.msra.mxu0 0.0
    %329 = vmatprep.subr.mxu0 0.0
    %330 = vmatpush1.msra.mxu0 0.0
    %331 = vmatprep.subr.mxu0 0.0
    %332 = vmatpush1.msra.mxu0 0.0
    %333 = vmatprep.subr.mxu0 0.0
    %334 = vmatpush1.msra.mxu0 0.0
    %335 = vmatprep.subr.mxu0 0.0
    %336 = vmatpush1.msra.mxu0 0.0
    %337 = vmatprep.subr.mxu0 0.0
    %338 = vmatpush1.msra.mxu0 0.0
    %339 = vmatprep.subr.mxu0 0.0
    %340 = vmatpush1.msra.mxu0 0.0
    %341 = vmatprep.subr.mxu0 0.0
    %342 = vmatpush1.msra.mxu0 0.0
    %343 = vmatprep.subr.mxu0 0.0
    %344 = vmatpush1.msra.mxu0 0.0
    %345 = vmatprep.subr.mxu0 0.0
    %346 = vmatpush1.msra.mxu0 0.0
    %347 = vmatprep.subr.mxu0 0.0
    %348 = vmatpush1.msra.mxu0 0.0
    %349 = vmatprep.subr.mxu0 0.0
    %350 = vmatpush1.msra.mxu0 0.0
    %351 = vmatprep.subr.mxu0 0.0
    %352 = vmatpush1.msra.mxu0 0.0
    %353 = vmatprep.subr.mxu0 0.0
    %354 = vmatpush1.msra.mxu0 0.0
    %355 = vmatprep.subr.mxu0 0.0
    %356 = vmatpush1.msra.mxu0 0.0
    %357 = vmatprep.subr.mxu0 0.0
    %358 = vmatpush1.msra.mxu0 0.0
    %359 = vmatprep.subr.mxu0 0.0
    %360 = vmatpush1.msra.mxu0 0.0
    %361 = vmatprep.subr.mxu0 0.0
    %362 = vmatpush1.msra.mxu0 0.0
    %363 = vmatprep.subr.mxu0 0.0
    %364 = vmatpush1.msra.mxu0 0.0
    %365 = vmatprep.subr.mxu0 0.0
    %366 = vmatpush1.msra.mxu0 0.0
    %367 = vmatprep.subr.mxu0 0.0
    %368 = vmatpush1.msra.mxu0 0.0
    %369 = vmatprep.subr.mxu0 0.0
    %370 = vmatpush1.msra.mxu0 0.0
    %371 = vmatprep.subr.mxu0 0.0
    %372 = vmatpush1.msra.mxu0 0.0
    %373 = vmatprep.mubr.f32.mxu0 0.0
    %374 = vmatmul.mubr.f32.gmra.mrb[0].mxu0 %v307
    %v375 = vpop.f32.mrb[0].mxu0
    %v376 = vadd.f32 %v93, %v375
    %v377 = vpop.f32.mrb[0].mxu0
    %378 = vdwg.mxu0
    %v379 = vmax.f32 %v376, 0.0
    %v381 = vsel %vm305, %v379, 0
    %383 = vmatprep.subr.mxu0 0.0
    %384 = vmatpush1.msra.mxu0 %v94
    %385 = vmatprep.subr.mxu0 0.0
    %386 = vmatpush1.msra.mxu0 %v95
    %387 = vmatprep.subr.mxu0 0.0
    %388 = vmatpush1.msra.mxu0 %v96
    %389 = vmatprep.subr.mxu0 0.0
    %390 = vmatpush1.msra.mxu0 %v97
    %391 = vmatprep.subr.mxu0 0.0
    %392 = vmatpush1.msra.mxu0 0.0
    %393 = vmatprep.subr.mxu0 0.0
    %394 = vmatpush1.msra.mxu0 0.0
    %395 = vmatprep.subr.mxu0 0.0
    %396 = vmatpush1.msra.mxu0 0.0
    %397 = vmatprep.subr.mxu0 0.0
    %398 = vmatpush1.msra.mxu0 0.0
    %399 = vmatprep.subr.mxu0 0.0
    %400 = vmatpush1.msra.mxu0 0.0
    %401 = vmatprep.subr.mxu0 0.0
    %402 = vmatpush1.msra.mxu0 0.0
    %403 = vmatprep.subr.mxu0 0.0
    %404 = vmatpush1.msra.mxu0 0.0
    %405 = vmatprep.subr.mxu0 0.0
    %406 = vmatpush1.msra.mxu0 0.0
    %407 = vmatprep.subr.mxu0 0.0
    %408 = vmatpush1.msra.mxu0 0.0
    %409 = vmatprep.subr.mxu0 0.0
    %410 = vmatpush1.msra.mxu0 0.0
    %411 = vmatprep.subr.mxu0 0.0
    %412 = vmatpush1.msra.mxu0 0.0
    %413 = vmatprep.subr.mxu0 0.0
    %414 = vmatpush1.msra.mxu0 0.0
    %415 = vmatprep.subr.mxu0 0.0
    %416 = vmatpush1.msra.mxu0 0.0
    %417 = vmatprep.subr.mxu0 0.0
    %418 = vmatpush1.msra.mxu0 0.0
    %419 = vmatprep.subr.mxu0 0.0
    %420 = vmatpush1.msra.mxu0 0.0
    %421 = vmatprep.subr.mxu0 0.0
    %422 = vmatpush1.msra.mxu0 0.0
    %423 = vmatprep.subr.mxu0 0.0
    %424 = vmatpush1.msra.mxu0 0.0
    %425 = vmatprep.subr.mxu0 0.0
    %426 = vmatpush1.msra.mxu0 0.0
    %427 = vmatprep.subr.mxu0 0.0
    %428 = vmatpush1.msra.mxu0 0.0
    %429 = vmatprep.subr.mxu0 0.0
    %430 = vmatpush1.msra.mxu0 0.0
    %431 = vmatprep.subr.mxu0 0.0
    %432 = vmatpush1.msra.mxu0 0.0
    %433 = vmatprep.subr.mxu0 0.0
    %434 = vmatpush1.msra.mxu0 0.0
    %435 = vmatprep.subr.mxu0 0.0
    %436 = vmatpush1.msra.mxu0 0.0
    %437 = vmatprep.subr.mxu0 0.0
    %438 = vmatpush1.msra.mxu0 0.0
    %439 = vmatprep.subr.mxu0 0.0
    %440 = vmatpush1.msra.mxu0 0.0
    %441 = vmatprep.subr.mxu0 0.0
    %442 = vmatpush1.msra.mxu0 0.0
    %443 = vmatprep.subr.mxu0 0.0
    %444 = vmatpush1.msra.mxu0 0.0
    %445 = vmatprep.subr.mxu0 0.0
    %446 = vmatpush1.msra.mxu0 0.0
    %447 = vmatprep.mubr.f32.mxu0 0.0
    %448 = vmatmul.mubr.f32.gmra.mrb[0].mxu0 %v381
    %v449 = vpop.f32.mrb[0].mxu0
    %v450 = vadd.f32 0.0, %v449
    %v451 = vpop.f32.mrb[0].mxu0
    %452 = vdwg.mxu0
    %v453 = vmax.f32 %v450, -10.0
    %v454 = vmin.f32 %v453, 10.0
    %455 = vmatprep.subr.mxu0 0.0
    %456 = vmatpush1.msra.mxu0 %v98
    %457 = vmatprep.subr.mxu0 0.0
    %458 = vmatpush1.msra.mxu0 %v99
    %459 = vmatprep.subr.mxu0 0.0
    %460 = vmatpush1.msra.mxu0 %v100
    %461 = vmatprep.subr.mxu0 0.0
    %462 = vmatpush1.msra.mxu0 %v101
    %463 = vmatprep.subr.mxu0 0.0
    %464 = vmatpush1.msra.mxu0 0.0
    %465 = vmatprep.subr.mxu0 0.0
    %466 = vmatpush1.msra.mxu0 0.0
    %467 = vmatprep.subr.mxu0 0.0
    %468 = vmatpush1.msra.mxu0 0.0
    %469 = vmatprep.subr.mxu0 0.0
    %470 = vmatpush1.msra.mxu0 0.0
    %471 = vmatprep.subr.mxu0 0.0
    %472 = vmatpush1.msra.mxu0 0.0
    %473 = vmatprep.subr.mxu0 0.0
    %474 = vmatpush1.msra.mxu0 0.0
    %475 = vmatprep.subr.mxu0 0.0
    %476 = vmatpush1.msra.mxu0 0.0
    %477 = vmatprep.subr.mxu0 0.0
    %478 = vmatpush1.msra.mxu0 0.0
    %479 = vmatprep.subr.mxu0 0.0
    %480 = vmatpush1.msra.mxu0 0.0
    %481 = vmatprep.subr.mxu0 0.0
    %482 = vmatpush1.msra.mxu0 0.0
    %483 = vmatprep.subr.mxu0 0.0
    %484 = vmatpush1.msra.mxu0 0.0
    %485 = vmatprep.subr.mxu0 0.0
    %486 = vmatpush1.msra.mxu0 0.0
    %487 = vmatprep.subr.mxu0 0.0
    %488 = vmatpush1.msra.mxu0 0.0
    %489 = vmatprep.subr.mxu0 0.0
    %490 = vmatpush1.msra.mxu0 0.0
    %491 = vmatprep.subr.mxu0 0.0
    %492 = vmatpush1.msra.mxu0 0.0
    %493 = vmatprep.subr.mxu0 0.0
    %494 = vmatpush1.msra.mxu0 0.0
    %495 = vmatprep.subr.mxu0 0.0
    %496 = vmatpush1.msra.mxu0 0.0
    %497 = vmatprep.subr.mxu0 0.0
    %498 = vmatpush1.msra.mxu0 0.0
    %499 = vmatprep.subr.mxu0 0.0
    %500 = vmatpush1.msra.mxu0 0.0
    %501 = vmatprep.subr.mxu0 0.0
    %502 = vmatpush1.msra.mxu0 0.0
    %503 = vmatprep.subr.mxu0 0.0
    %504 = vmatpush1.msra.mxu0 0.0
    %505 = vmatprep.subr.mxu0 0.0
    %506 = vmatpush1.msra.mxu0 0.0
    %507 = vmatprep.subr.mxu0 0.0
    %508 = vmatpush1.msra.mxu0 0.0
    %509 = vmatprep.subr.mxu0 0.0
    %510 = vmatpush1.msra.mxu0 0.0
    %511 = vmatprep.subr.mxu0 0.0
    %512 = vmatpush1.msra.mxu0 0.0
    %513 = vmatprep.subr.mxu0 0.0
    %514 = vmatpush1.msra.mxu0 0.0
    %515 = vmatprep.subr.mxu0 0.0
    %516 = vmatpush1.msra.mxu0 0.0
    %517 = vmatprep.subr.mxu0 0.0
    %518 = vmatpush1.msra.mxu0 0.0
    %519 = vmatprep.mubr.f32.mxu0 0.0
    %520 = vmatmul.mubr.f32.gmra.mrb[0].mxu0 %v381
    %v521 = vpop.f32.mrb[0].mxu0
    %v522 = vadd.f32 0.0, %v521
    %v523 = vpop.f32.mrb[0].mxu0
    %524 = vdwg.mxu0
    %v525 = vmax.f32 %v522, -10.0
    %v526 = vmin.f32 %v525, 10.0
    %v527 = vmul.f32 %v454, 1.442695
    %v528 = vpow.pop %v527
    %v529 = vmul.f32 %v77, %v528
    %v530 = vadd.f32 %v529, %v526
    %v531 = vand.u32 2147483647, %v454
    %v532 = vadd.f32 %v531, 1e-09
    %v533 = vlog2.pop %v532
    %v534 = vmul.f32 %v533, 0.6931472
    %v535 = vsel %vm122, %v534, 0.0
    %536 = vadd.xlane.f32.xlu0 %v535
    %v537 = vpop.xlane.xlu0 %536
    %v538 = vmul.f32 %v537, 0.25
    %v539 = vadd.f32 %v538, 0.0
    %v541 = vsel %vm225, %v530, 0
    %v544 = vsel %vm229, %v83, 0
    %546 = vmatprep.subr.mxu0 0.0
    %547 = vmatpush1.msra.mxu0 %v544
    %548 = vmatprep.subr.mxu0 0.0
    %549 = vmatpush1.msra.mxu0 0.0
    %550 = vmatprep.subr.mxu0 0.0
    %551 = vmatpush1.msra.mxu0 0.0
    %552 = vmatprep.subr.mxu0 0.0
    %553 = vmatpush1.msra.mxu0 0.0
    %554 = vmatprep.subr.mxu0 0.0
    %555 = vmatpush1.msra.mxu0 0.0
    %556 = vmatprep.subr.mxu0 0.0
    %557 = vmatpush1.msra.mxu0 0.0
    %558 = vmatprep.subr.mxu0 0.0
    %559 = vmatpush1.msra.mxu0 0.0
    %560 = vmatprep.subr.mxu0 0.0
    %561 = vmatpush1.msra.mxu0 0.0
    %562 = vmatprep.subr.mxu0 0.0
    %563 = vmatpush1.msra.mxu0 0.0
    %564 = vmatprep.subr.mxu0 0.0
    %565 = vmatpush1.msra.mxu0 0.0
    %566 = vmatprep.subr.mxu0 0.0
    %567 = vmatpush1.msra.mxu0 0.0
    %568 = vmatprep.subr.mxu0 0.0
    %569 = vmatpush1.msra.mxu0 0.0
    %570 = vmatprep.subr.mxu0 0.0
    %571 = vmatpush1.msra.mxu0 0.0
    %572 = vmatprep.subr.mxu0 0.0
    %573 = vmatpush1.msra.mxu0 0.0
    %574 = vmatprep.subr.mxu0 0.0
    %575 = vmatpush1.msra.mxu0 0.0
    %576 = vmatprep.subr.mxu0 0.0
    %577 = vmatpush1.msra.mxu0 0.0
    %578 = vmatprep.subr.mxu0 0.0
    %579 = vmatpush1.msra.mxu0 0.0
    %580 = vmatprep.subr.mxu0 0.0
    %581 = vmatpush1.msra.mxu0 0.0
    %582 = vmatprep.subr.mxu0 0.0
    %583 = vmatpush1.msra.mxu0 0.0
    %584 = vmatprep.subr.mxu0 0.0
    %585 = vmatpush1.msra.mxu0 0.0
    %586 = vmatprep.subr.mxu0 0.0
    %587 = vmatpush1.msra.mxu0 0.0
    %588 = vmatprep.subr.mxu0 0.0
    %589 = vmatpush1.msra.mxu0 0.0
    %590 = vmatprep.subr.mxu0 0.0
    %591 = vmatpush1.msra.mxu0 0.0
    %592 = vmatprep.subr.mxu0 0.0
    %593 = vmatpush1.msra.mxu0 0.0
    %594 = vmatprep.subr.mxu0 0.0
    %595 = vmatpush1.msra.mxu0 0.0
    %596 = vmatprep.subr.mxu0 0.0
    %597 = vmatpush1.msra.mxu0 0.0
    %598 = vmatprep.subr.mxu0 0.0
    %599 = vmatpush1.msra.mxu0 0.0
    %600 = vmatprep.subr.mxu0 0.0
    %601 = vmatpush1.msra.mxu0 0.0
    %602 = vmatprep.subr.mxu0 0.0
    %603 = vmatpush1.msra.mxu0 0.0
    %604 = vmatprep.subr.mxu0 0.0
    %605 = vmatpush1.msra.mxu0 0.0
    %606 = vmatprep.subr.mxu0 0.0
    %607 = vmatpush1.msra.mxu0 0.0
    %608 = vmatprep.subr.mxu0 0.0
    %609 = vmatpush1.msra.mxu0 0.0
    %610 = vmatprep.mubr.f32.mxu0 0.0
    %611 = vmatmul.mubr.f32.gmra.mrb[0].mxu0 %v541
    %v612 = vpop.f32.mrb[0].mxu0
    %v613 = vadd.f32 0.0, %v612
    %v614 = vpop.f32.mrb[0].mxu0
    %615 = vdwg.mxu0
    %v617 = vsel %vm225, %v76, 0
    %v620 = vsel %vm229, %v80, 0
    %622 = vmatprep.subr.mxu0 0.0
    %623 = vmatpush1.msra.mxu0 %v620
    %624 = vmatprep.subr.mxu0 0.0
    %625 = vmatpush1.msra.mxu0 0.0
    %626 = vmatprep.subr.mxu0 0.0
    %627 = vmatpush1.msra.mxu0 0.0
    %628 = vmatprep.subr.mxu0 0.0
    %629 = vmatpush1.msra.mxu0 0.0
    %630 = vmatprep.subr.mxu0 0.0
    %631 = vmatpush1.msra.mxu0 0.0
    %632 = vmatprep.subr.mxu0 0.0
    %633 = vmatpush1.msra.mxu0 0.0
    %634 = vmatprep.subr.mxu0 0.0
    %635 = vmatpush1.msra.mxu0 0.0
    %636 = vmatprep.subr.mxu0 0.0
    %637 = vmatpush1.msra.mxu0 0.0
    %638 = vmatprep.subr.mxu0 0.0
    %639 = vmatpush1.msra.mxu0 0.0
    %640 = vmatprep.subr.mxu0 0.0
    %641 = vmatpush1.msra.mxu0 0.0
    %642 = vmatprep.subr.mxu0 0.0
    %643 = vmatpush1.msra.mxu0 0.0
    %644 = vmatprep.subr.mxu0 0.0
    %645 = vmatpush1.msra.mxu0 0.0
    %646 = vmatprep.subr.mxu0 0.0
    %647 = vmatpush1.msra.mxu0 0.0
    %648 = vmatprep.subr.mxu0 0.0
    %649 = vmatpush1.msra.mxu0 0.0
    %650 = vmatprep.subr.mxu0 0.0
    %651 = vmatpush1.msra.mxu0 0.0
    %652 = vmatprep.subr.mxu0 0.0
    %653 = vmatpush1.msra.mxu0 0.0
    %654 = vmatprep.subr.mxu0 0.0
    %655 = vmatpush1.msra.mxu0 0.0
    %656 = vmatprep.subr.mxu0 0.0
    %657 = vmatpush1.msra.mxu0 0.0
    %658 = vmatprep.subr.mxu0 0.0
    %659 = vmatpush1.msra.mxu0 0.0
    %660 = vmatprep.subr.mxu0 0.0
    %661 = vmatpush1.msra.mxu0 0.0
    %662 = vmatprep.subr.mxu0 0.0
    %663 = vmatpush1.msra.mxu0 0.0
    %664 = vmatprep.subr.mxu0 0.0
    %665 = vmatpush1.msra.mxu0 0.0
    %666 = vmatprep.subr.mxu0 0.0
    %667 = vmatpush1.msra.mxu0 0.0
    %668 = vmatprep.subr.mxu0 0.0
    %669 = vmatpush1.msra.mxu0 0.0
    %670 = vmatprep.subr.mxu0 0.0
    %671 = vmatpush1.msra.mxu0 0.0
    %672 = vmatprep.subr.mxu0 0.0
    %673 = vmatpush1.msra.mxu0 0.0
    %674 = vmatprep.subr.mxu0 0.0
    %675 = vmatpush1.msra.mxu0 0.0
    %676 = vmatprep.subr.mxu0 0.0
    %677 = vmatpush1.msra.mxu0 0.0
    %678 = vmatprep.subr.mxu0 0.0
    %679 = vmatpush1.msra.mxu0 0.0
    %680 = vmatprep.subr.mxu0 0.0
    %681 = vmatpush1.msra.mxu0 0.0
    %682 = vmatprep.subr.mxu0 0.0
    %683 = vmatpush1.msra.mxu0 0.0
    %684 = vmatprep.subr.mxu0 0.0
    %685 = vmatpush1.msra.mxu0 0.0
    %686 = vmatprep.mubr.f32.mxu0 0.0
    %687 = vmatmul.mubr.f32.gmra.mrb[0].mxu0 %v617
    %v688 = vpop.f32.mrb[0].mxu0
    %v689 = vadd.f32 %v613, %v688
    %v690 = vpop.f32.mrb[0].mxu0
    %691 = vdwg.mxu0
    %v692 = vrot.slane %v79, 1
    %v694 = vadd.f32 %v689, %v692
    %v695 = vcombine.high %v110, %v110
    %v697 = vunpack.c.l.s4 1966171168
    %v698 = vunpack.c.0.s8 %v697
    %v699 = vlaneseq
    %v700 = vshrl.u32 %v699, 7
    %v701 = vsub.s32 %v698, %v700
    %v702 = vrot.slane %v695, %v701
    %703 = vrot.lane.b32.xlu0 %v702, 124
    %v704 = vpop.permute.xlu0 %703
    %v706 = vadd.f32 %v78, %v704
    %v707 = vsel %vm122, %v694, 0.0
    %708 = vadd.xlane.f32.xlu0 %v707
    %v709 = vpop.xlane.xlu0 %708
    %v710 = vsel %vm126, %v706, 0.0
    %711 = vadd.xlane.f32.xlu0 %v710
    %v712 = vpop.xlane.xlu0 %711
    %v713 = vadd.f32 %v709, %v712
    %v714 = vmul.f32 %v713, 0.14285715
    %v715 = vsub.f32 %v694, %v714
    %v716 = vsub.f32 %v706, %v714
    %v717 = vmul.f32 %v715, %v715
    %v718 = vsel %vm122, %v717, 0.0
    %719 = vadd.xlane.f32.xlu0 %v718
    %v720 = vpop.xlane.xlu0 %719
    %v721 = vmul.f32 %v716, %v716
    %v722 = vsel %vm126, %v721, 0.0
    %723 = vadd.xlane.f32.xlu0 %v722
    %v724 = vpop.xlane.xlu0 %723
    %v725 = vadd.f32 %v720, %v724
    %v726 = vmul.f32 %v725, 0.16666667
    %v727 = vrsqrt.pop %v726
    %v728 = vmul.f32 %v715, %v727
    %v729 = vmul.f32 %v716, %v727
    %v731 = vsel %vm147, %v729, 0
    %733 = vmatprep.subr.mxu0 0.0
    %734 = vmatpush1.msra.mxu0 %v153
    %735 = vmatprep.subr.mxu0 0.0
    %736 = vmatpush1.msra.mxu0 0.0
    %737 = vmatprep.subr.mxu0 0.0
    %738 = vmatpush1.msra.mxu0 0.0
    %739 = vmatprep.subr.mxu0 0.0
    %740 = vmatpush1.msra.mxu0 0.0
    %741 = vmatprep.subr.mxu0 0.0
    %742 = vmatpush1.msra.mxu0 0.0
    %743 = vmatprep.subr.mxu0 0.0
    %744 = vmatpush1.msra.mxu0 0.0
    %745 = vmatprep.subr.mxu0 0.0
    %746 = vmatpush1.msra.mxu0 0.0
    %747 = vmatprep.subr.mxu0 0.0
    %748 = vmatpush1.msra.mxu0 0.0
    %749 = vmatprep.subr.mxu0 0.0
    %750 = vmatpush1.msra.mxu0 0.0
    %751 = vmatprep.subr.mxu0 0.0
    %752 = vmatpush1.msra.mxu0 0.0
    %753 = vmatprep.subr.mxu0 0.0
    %754 = vmatpush1.msra.mxu0 0.0
    %755 = vmatprep.subr.mxu0 0.0
    %756 = vmatpush1.msra.mxu0 0.0
    %757 = vmatprep.subr.mxu0 0.0
    %758 = vmatpush1.msra.mxu0 0.0
    %759 = vmatprep.subr.mxu0 0.0
    %760 = vmatpush1.msra.mxu0 0.0
    %761 = vmatprep.subr.mxu0 0.0
    %762 = vmatpush1.msra.mxu0 0.0
    %763 = vmatprep.subr.mxu0 0.0
    %764 = vmatpush1.msra.mxu0 0.0
    %765 = vmatprep.subr.mxu0 0.0
    %766 = vmatpush1.msra.mxu0 0.0
    %767 = vmatprep.subr.mxu0 0.0
    %768 = vmatpush1.msra.mxu0 0.0
    %769 = vmatprep.subr.mxu0 0.0
    %770 = vmatpush1.msra.mxu0 0.0
    %771 = vmatprep.subr.mxu0 0.0
    %772 = vmatpush1.msra.mxu0 0.0
    %773 = vmatprep.subr.mxu0 0.0
    %774 = vmatpush1.msra.mxu0 0.0
    %775 = vmatprep.subr.mxu0 0.0
    %776 = vmatpush1.msra.mxu0 0.0
    %777 = vmatprep.subr.mxu0 0.0
    %778 = vmatpush1.msra.mxu0 0.0
    %779 = vmatprep.subr.mxu0 0.0
    %780 = vmatpush1.msra.mxu0 0.0
    %781 = vmatprep.subr.mxu0 0.0
    %782 = vmatpush1.msra.mxu0 0.0
    %783 = vmatprep.subr.mxu0 0.0
    %784 = vmatpush1.msra.mxu0 0.0
    %785 = vmatprep.subr.mxu0 0.0
    %786 = vmatpush1.msra.mxu0 0.0
    %787 = vmatprep.subr.mxu0 0.0
    %788 = vmatpush1.msra.mxu0 0.0
    %789 = vmatprep.subr.mxu0 0.0
    %790 = vmatpush1.msra.mxu0 0.0
    %791 = vmatprep.subr.mxu0 0.0
    %792 = vmatpush1.msra.mxu0 0.0
    %793 = vmatprep.subr.mxu0 0.0
    %794 = vmatpush1.msra.mxu0 0.0
    %795 = vmatprep.subr.mxu0 0.0
    %796 = vmatpush1.msra.mxu0 0.0
    %797 = vmatprep.mubr.f32.mxu0 0.0
    %798 = vmatmul.mubr.f32.gmra.mrb[0].mxu0 %v731
    %v799 = vpop.f32.mrb[0].mxu0
    %v800 = vadd.f32 0.0, %v799
    %v801 = vpop.f32.mrb[0].mxu0
    %802 = vdwg.mxu0
    %v804 = vsel %vm225, %v728, 0
    %806 = vmatprep.subr.mxu0 0.0
    %807 = vmatpush1.msra.mxu0 %v231
    %808 = vmatprep.subr.mxu0 0.0
    %809 = vmatpush1.msra.mxu0 0.0
    %810 = vmatprep.subr.mxu0 0.0
    %811 = vmatpush1.msra.mxu0 0.0
    %812 = vmatprep.subr.mxu0 0.0
    %813 = vmatpush1.msra.mxu0 0.0
    %814 = vmatprep.subr.mxu0 0.0
    %815 = vmatpush1.msra.mxu0 0.0
    %816 = vmatprep.subr.mxu0 0.0
    %817 = vmatpush1.msra.mxu0 0.0
    %818 = vmatprep.subr.mxu0 0.0
    %819 = vmatpush1.msra.mxu0 0.0
    %820 = vmatprep.subr.mxu0 0.0
    %821 = vmatpush1.msra.mxu0 0.0
    %822 = vmatprep.subr.mxu0 0.0
    %823 = vmatpush1.msra.mxu0 0.0
    %824 = vmatprep.subr.mxu0 0.0
    %825 = vmatpush1.msra.mxu0 0.0
    %826 = vmatprep.subr.mxu0 0.0
    %827 = vmatpush1.msra.mxu0 0.0
    %828 = vmatprep.subr.mxu0 0.0
    %829 = vmatpush1.msra.mxu0 0.0
    %830 = vmatprep.subr.mxu0 0.0
    %831 = vmatpush1.msra.mxu0 0.0
    %832 = vmatprep.subr.mxu0 0.0
    %833 = vmatpush1.msra.mxu0 0.0
    %834 = vmatprep.subr.mxu0 0.0
    %835 = vmatpush1.msra.mxu0 0.0
    %836 = vmatprep.subr.mxu0 0.0
    %837 = vmatpush1.msra.mxu0 0.0
    %838 = vmatprep.subr.mxu0 0.0
    %839 = vmatpush1.msra.mxu0 0.0
    %840 = vmatprep.subr.mxu0 0.0
    %841 = vmatpush1.msra.mxu0 0.0
    %842 = vmatprep.subr.mxu0 0.0
    %843 = vmatpush1.msra.mxu0 0.0
    %844 = vmatprep.subr.mxu0 0.0
    %845 = vmatpush1.msra.mxu0 0.0
    %846 = vmatprep.subr.mxu0 0.0
    %847 = vmatpush1.msra.mxu0 0.0
    %848 = vmatprep.subr.mxu0 0.0
    %849 = vmatpush1.msra.mxu0 0.0
    %850 = vmatprep.subr.mxu0 0.0
    %851 = vmatpush1.msra.mxu0 0.0
    %852 = vmatprep.subr.mxu0 0.0
    %853 = vmatpush1.msra.mxu0 0.0
    %854 = vmatprep.subr.mxu0 0.0
    %855 = vmatpush1.msra.mxu0 0.0
    %856 = vmatprep.subr.mxu0 0.0
    %857 = vmatpush1.msra.mxu0 0.0
    %858 = vmatprep.subr.mxu0 0.0
    %859 = vmatpush1.msra.mxu0 0.0
    %860 = vmatprep.subr.mxu0 0.0
    %861 = vmatpush1.msra.mxu0 0.0
    %862 = vmatprep.subr.mxu0 0.0
    %863 = vmatpush1.msra.mxu0 0.0
    %864 = vmatprep.subr.mxu0 0.0
    %865 = vmatpush1.msra.mxu0 0.0
    %866 = vmatprep.subr.mxu0 0.0
    %867 = vmatpush1.msra.mxu0 0.0
    %868 = vmatprep.subr.mxu0 0.0
    %869 = vmatpush1.msra.mxu0 0.0
    %870 = vmatprep.mubr.f32.mxu0 0.0
    %871 = vmatmul.mubr.f32.gmra.mrb[0].mxu0 %v804
    %v872 = vpop.f32.mrb[0].mxu0
    %v873 = vadd.f32 %v800, %v872
    %v874 = vpop.f32.mrb[0].mxu0
    %875 = vdwg.mxu0
    %v876 = vadd.f32 %v873, %v88
    %v877 = vmax.f32 %v876, 0.0
    %v879 = vsel %vm305, %v877, 0
    %881 = vmatprep.subr.mxu0 0.0
    %882 = vmatpush1.msra.mxu0 %v89
    %883 = vmatprep.subr.mxu0 0.0
    %884 = vmatpush1.msra.mxu0 %v90
    %885 = vmatprep.subr.mxu0 0.0
    %886 = vmatpush1.msra.mxu0 %v91
    %887 = vmatprep.subr.mxu0 0.0
    %888 = vmatpush1.msra.mxu0 %v92
    %889 = vmatprep.subr.mxu0 0.0
    %890 = vmatpush1.msra.mxu0 0.0
    %891 = vmatprep.subr.mxu0 0.0
    %892 = vmatpush1.msra.mxu0 0.0
    %893 = vmatprep.subr.mxu0 0.0
    %894 = vmatpush1.msra.mxu0 0.0
    %895 = vmatprep.subr.mxu0 0.0
    %896 = vmatpush1.msra.mxu0 0.0
    %897 = vmatprep.subr.mxu0 0.0
    %898 = vmatpush1.msra.mxu0 0.0
    %899 = vmatprep.subr.mxu0 0.0
    %900 = vmatpush1.msra.mxu0 0.0
    %901 = vmatprep.subr.mxu0 0.0
    %902 = vmatpush1.msra.mxu0 0.0
    %903 = vmatprep.subr.mxu0 0.0
    %904 = vmatpush1.msra.mxu0 0.0
    %905 = vmatprep.subr.mxu0 0.0
    %906 = vmatpush1.msra.mxu0 0.0
    %907 = vmatprep.subr.mxu0 0.0
    %908 = vmatpush1.msra.mxu0 0.0
    %909 = vmatprep.subr.mxu0 0.0
    %910 = vmatpush1.msra.mxu0 0.0
    %911 = vmatprep.subr.mxu0 0.0
    %912 = vmatpush1.msra.mxu0 0.0
    %913 = vmatprep.subr.mxu0 0.0
    %914 = vmatpush1.msra.mxu0 0.0
    %915 = vmatprep.subr.mxu0 0.0
    %916 = vmatpush1.msra.mxu0 0.0
    %917 = vmatprep.subr.mxu0 0.0
    %918 = vmatpush1.msra.mxu0 0.0
    %919 = vmatprep.subr.mxu0 0.0
    %920 = vmatpush1.msra.mxu0 0.0
    %921 = vmatprep.subr.mxu0 0.0
    %922 = vmatpush1.msra.mxu0 0.0
    %923 = vmatprep.subr.mxu0 0.0
    %924 = vmatpush1.msra.mxu0 0.0
    %925 = vmatprep.subr.mxu0 0.0
    %926 = vmatpush1.msra.mxu0 0.0
    %927 = vmatprep.subr.mxu0 0.0
    %928 = vmatpush1.msra.mxu0 0.0
    %929 = vmatprep.subr.mxu0 0.0
    %930 = vmatpush1.msra.mxu0 0.0
    %931 = vmatprep.subr.mxu0 0.0
    %932 = vmatpush1.msra.mxu0 0.0
    %933 = vmatprep.subr.mxu0 0.0
    %934 = vmatpush1.msra.mxu0 0.0
    %935 = vmatprep.subr.mxu0 0.0
    %936 = vmatpush1.msra.mxu0 0.0
    %937 = vmatprep.subr.mxu0 0.0
    %938 = vmatpush1.msra.mxu0 0.0
    %939 = vmatprep.subr.mxu0 0.0
    %940 = vmatpush1.msra.mxu0 0.0
    %941 = vmatprep.subr.mxu0 0.0
    %942 = vmatpush1.msra.mxu0 0.0
    %943 = vmatprep.subr.mxu0 0.0
    %944 = vmatpush1.msra.mxu0 0.0
    %945 = vmatprep.mubr.f32.mxu0 0.0
    %946 = vmatmul.mubr.f32.gmra.mrb[0].mxu0 %v879
    %v947 = vpop.f32.mrb[0].mxu0
    %v948 = vadd.f32 %v93, %v947
    %v949 = vpop.f32.mrb[0].mxu0
    %950 = vdwg.mxu0
    %v951 = vmax.f32 %v948, 0.0
    %v953 = vsel %vm305, %v951, 0
    %955 = vmatprep.subr.mxu0 0.0
    %956 = vmatpush1.msra.mxu0 %v94
    %957 = vmatprep.subr.mxu0 0.0
    %958 = vmatpush1.msra.mxu0 %v95
    %959 = vmatprep.subr.mxu0 0.0
    %960 = vmatpush1.msra.mxu0 %v96
    %961 = vmatprep.subr.mxu0 0.0
    %962 = vmatpush1.msra.mxu0 %v97
    %963 = vmatprep.subr.mxu0 0.0
    %964 = vmatpush1.msra.mxu0 0.0
    %965 = vmatprep.subr.mxu0 0.0
    %966 = vmatpush1.msra.mxu0 0.0
    %967 = vmatprep.subr.mxu0 0.0
    %968 = vmatpush1.msra.mxu0 0.0
    %969 = vmatprep.subr.mxu0 0.0
    %970 = vmatpush1.msra.mxu0 0.0
    %971 = vmatprep.subr.mxu0 0.0
    %972 = vmatpush1.msra.mxu0 0.0
    %973 = vmatprep.subr.mxu0 0.0
    %974 = vmatpush1.msra.mxu0 0.0
    %975 = vmatprep.subr.mxu0 0.0
    %976 = vmatpush1.msra.mxu0 0.0
    %977 = vmatprep.subr.mxu0 0.0
    %978 = vmatpush1.msra.mxu0 0.0
    %979 = vmatprep.subr.mxu0 0.0
    %980 = vmatpush1.msra.mxu0 0.0
    %981 = vmatprep.subr.mxu0 0.0
    %982 = vmatpush1.msra.mxu0 0.0
    %983 = vmatprep.subr.mxu0 0.0
    %984 = vmatpush1.msra.mxu0 0.0
    %985 = vmatprep.subr.mxu0 0.0
    %986 = vmatpush1.msra.mxu0 0.0
    %987 = vmatprep.subr.mxu0 0.0
    %988 = vmatpush1.msra.mxu0 0.0
    %989 = vmatprep.subr.mxu0 0.0
    %990 = vmatpush1.msra.mxu0 0.0
    %991 = vmatprep.subr.mxu0 0.0
    %992 = vmatpush1.msra.mxu0 0.0
    %993 = vmatprep.subr.mxu0 0.0
    %994 = vmatpush1.msra.mxu0 0.0
    %995 = vmatprep.subr.mxu0 0.0
    %996 = vmatpush1.msra.mxu0 0.0
    %997 = vmatprep.subr.mxu0 0.0
    %998 = vmatpush1.msra.mxu0 0.0
    %999 = vmatprep.subr.mxu0 0.0
    %1000 = vmatpush1.msra.mxu0 0.0
    %1001 = vmatprep.subr.mxu0 0.0
    %1002 = vmatpush1.msra.mxu0 0.0
    %1003 = vmatprep.subr.mxu0 0.0
    %1004 = vmatpush1.msra.mxu0 0.0
    %1005 = vmatprep.subr.mxu0 0.0
    %1006 = vmatpush1.msra.mxu0 0.0
    %1007 = vmatprep.subr.mxu0 0.0
    %1008 = vmatpush1.msra.mxu0 0.0
    %1009 = vmatprep.subr.mxu0 0.0
    %1010 = vmatpush1.msra.mxu0 0.0
    %1011 = vmatprep.subr.mxu0 0.0
    %1012 = vmatpush1.msra.mxu0 0.0
    %1013 = vmatprep.subr.mxu0 0.0
    %1014 = vmatpush1.msra.mxu0 0.0
    %1015 = vmatprep.subr.mxu0 0.0
    %1016 = vmatpush1.msra.mxu0 0.0
    %1017 = vmatprep.subr.mxu0 0.0
    %1018 = vmatpush1.msra.mxu0 0.0
    %1019 = vmatprep.mubr.f32.mxu0 0.0
    %1020 = vmatmul.mubr.f32.gmra.mrb[0].mxu0 %v953
    %v1021 = vpop.f32.mrb[0].mxu0
    %v1022 = vadd.f32 0.0, %v1021
    %v1023 = vpop.f32.mrb[0].mxu0
    %1024 = vdwg.mxu0
    %v1025 = vmax.f32 %v1022, -10.0
    %v1026 = vmin.f32 %v1025, 10.0
    %1027 = vmatprep.subr.mxu0 0.0
    %1028 = vmatpush1.msra.mxu0 %v98
    %1029 = vmatprep.subr.mxu0 0.0
    %1030 = vmatpush1.msra.mxu0 %v99
    %1031 = vmatprep.subr.mxu0 0.0
    %1032 = vmatpush1.msra.mxu0 %v100
    %1033 = vmatprep.subr.mxu0 0.0
    %1034 = vmatpush1.msra.mxu0 %v101
    %1035 = vmatprep.subr.mxu0 0.0
    %1036 = vmatpush1.msra.mxu0 0.0
    %1037 = vmatprep.subr.mxu0 0.0
    %1038 = vmatpush1.msra.mxu0 0.0
    %1039 = vmatprep.subr.mxu0 0.0
    %1040 = vmatpush1.msra.mxu0 0.0
    %1041 = vmatprep.subr.mxu0 0.0
    %1042 = vmatpush1.msra.mxu0 0.0
    %1043 = vmatprep.subr.mxu0 0.0
    %1044 = vmatpush1.msra.mxu0 0.0
    %1045 = vmatprep.subr.mxu0 0.0
    %1046 = vmatpush1.msra.mxu0 0.0
    %1047 = vmatprep.subr.mxu0 0.0
    %1048 = vmatpush1.msra.mxu0 0.0
    %1049 = vmatprep.subr.mxu0 0.0
    %1050 = vmatpush1.msra.mxu0 0.0
    %1051 = vmatprep.subr.mxu0 0.0
    %1052 = vmatpush1.msra.mxu0 0.0
    %1053 = vmatprep.subr.mxu0 0.0
    %1054 = vmatpush1.msra.mxu0 0.0
    %1055 = vmatprep.subr.mxu0 0.0
    %1056 = vmatpush1.msra.mxu0 0.0
    %1057 = vmatprep.subr.mxu0 0.0
    %1058 = vmatpush1.msra.mxu0 0.0
    %1059 = vmatprep.subr.mxu0 0.0
    %1060 = vmatpush1.msra.mxu0 0.0
    %1061 = vmatprep.subr.mxu0 0.0
    %1062 = vmatpush1.msra.mxu0 0.0
    %1063 = vmatprep.subr.mxu0 0.0
    %1064 = vmatpush1.msra.mxu0 0.0
    %1065 = vmatprep.subr.mxu0 0.0
    %1066 = vmatpush1.msra.mxu0 0.0
    %1067 = vmatprep.subr.mxu0 0.0
    %1068 = vmatpush1.msra.mxu0 0.0
    %1069 = vmatprep.subr.mxu0 0.0
    %1070 = vmatpush1.msra.mxu0 0.0
    %1071 = vmatprep.subr.mxu0 0.0
    %1072 = vmatpush1.msra.mxu0 0.0
    %1073 = vmatprep.subr.mxu0 0.0
    %1074 = vmatpush1.msra.mxu0 0.0
    %1075 = vmatprep.subr.mxu0 0.0
    %1076 = vmatpush1.msra.mxu0 0.0
    %1077 = vmatprep.subr.mxu0 0.0
    %1078 = vmatpush1.msra.mxu0 0.0
    %1079 = vmatprep.subr.mxu0 0.0
    %1080 = vmatpush1.msra.mxu0 0.0
    %1081 = vmatprep.subr.mxu0 0.0
    %1082 = vmatpush1.msra.mxu0 0.0
    %1083 = vmatprep.subr.mxu0 0.0
    %1084 = vmatpush1.msra.mxu0 0.0
    %1085 = vmatprep.subr.mxu0 0.0
    %1086 = vmatpush1.msra.mxu0 0.0
    %1087 = vmatprep.subr.mxu0 0.0
    %1088 = vmatpush1.msra.mxu0 0.0
    %1089 = vmatprep.subr.mxu0 0.0
    %1090 = vmatpush1.msra.mxu0 0.0
    %1091 = vmatprep.mubr.f32.mxu0 0.0
    %1092 = vmatmul.mubr.f32.gmra.mrb[0].mxu0 %v953
    %v1093 = vpop.f32.mrb[0].mxu0
    %v1094 = vadd.f32 0.0, %v1093
    %v1095 = vpop.f32.mrb[0].mxu0
    %1096 = vdwg.mxu0
    %v1097 = vmax.f32 %v1094, -10.0
    %v1098 = vmin.f32 %v1097, 10.0
    %v1099 = vmul.f32 %v1026, 1.442695
    %v1100 = vpow.pop %v1099
    %1102 = vrot.lane.b32.xlu0 %v1100, 4
    %v1103 = vpop.permute.xlu0 %1102
    %v1105 = vmul.f32 %v689, %v1103
    %1107 = vrot.lane.b32.xlu0 %v1098, 4
    %v1108 = vpop.permute.xlu0 %1107
    %v1110 = vadd.f32 %v1105, %v1108
    %v1111 = vand.u32 2147483647, %v1026
    %v1112 = vadd.f32 %v1111, 1e-09
    %v1113 = vlog2.pop %v1112
    %v1114 = vmul.f32 %v1113, 0.6931472
    %v1115 = vsel %vm122, %v1114, 0.0
    %1116 = vadd.xlane.f32.xlu0 %v1115
    %v1117 = vpop.xlane.xlu0 %1116
    %v1118 = vmul.f32 %v1117, 0.25
    %v1119 = vadd.f32 %v539, %v1118
    %1121 = vrot.lane.b32.xlu0 %v1110, 124
    %v1122 = vpop.permute.xlu0 %1121
    %v1123 = vsel %vm225, %v1122, 0
    %v1126 = vsel %vm229, %v84, 0
    %1128 = vmatprep.subr.mxu0 0.0
    %1129 = vmatpush1.msra.mxu0 %v1126
    %1130 = vmatprep.subr.mxu0 0.0
    %1131 = vmatpush1.msra.mxu0 0.0
    %1132 = vmatprep.subr.mxu0 0.0
    %1133 = vmatpush1.msra.mxu0 0.0
    %1134 = vmatprep.subr.mxu0 0.0
    %1135 = vmatpush1.msra.mxu0 0.0
    %1136 = vmatprep.subr.mxu0 0.0
    %1137 = vmatpush1.msra.mxu0 0.0
    %1138 = vmatprep.subr.mxu0 0.0
    %1139 = vmatpush1.msra.mxu0 0.0
    %1140 = vmatprep.subr.mxu0 0.0
    %1141 = vmatpush1.msra.mxu0 0.0
    %1142 = vmatprep.subr.mxu0 0.0
    %1143 = vmatpush1.msra.mxu0 0.0
    %1144 = vmatprep.subr.mxu0 0.0
    %1145 = vmatpush1.msra.mxu0 0.0
    %1146 = vmatprep.subr.mxu0 0.0
    %1147 = vmatpush1.msra.mxu0 0.0
    %1148 = vmatprep.subr.mxu0 0.0
    %1149 = vmatpush1.msra.mxu0 0.0
    %1150 = vmatprep.subr.mxu0 0.0
    %1151 = vmatpush1.msra.mxu0 0.0
    %1152 = vmatprep.subr.mxu0 0.0
    %1153 = vmatpush1.msra.mxu0 0.0
    %1154 = vmatprep.subr.mxu0 0.0
    %1155 = vmatpush1.msra.mxu0 0.0
    %1156 = vmatprep.subr.mxu0 0.0
    %1157 = vmatpush1.msra.mxu0 0.0
    %1158 = vmatprep.subr.mxu0 0.0
    %1159 = vmatpush1.msra.mxu0 0.0
    %1160 = vmatprep.subr.mxu0 0.0
    %1161 = vmatpush1.msra.mxu0 0.0
    %1162 = vmatprep.subr.mxu0 0.0
    %1163 = vmatpush1.msra.mxu0 0.0
    %1164 = vmatprep.subr.mxu0 0.0
    %1165 = vmatpush1.msra.mxu0 0.0
    %1166 = vmatprep.subr.mxu0 0.0
    %1167 = vmatpush1.msra.mxu0 0.0
    %1168 = vmatprep.subr.mxu0 0.0
    %1169 = vmatpush1.msra.mxu0 0.0
    %1170 = vmatprep.subr.mxu0 0.0
    %1171 = vmatpush1.msra.mxu0 0.0
    %1172 = vmatprep.subr.mxu0 0.0
    %1173 = vmatpush1.msra.mxu0 0.0
    %1174 = vmatprep.subr.mxu0 0.0
    %1175 = vmatpush1.msra.mxu0 0.0
    %1176 = vmatprep.subr.mxu0 0.0
    %1177 = vmatpush1.msra.mxu0 0.0
    %1178 = vmatprep.subr.mxu0 0.0
    %1179 = vmatpush1.msra.mxu0 0.0
    %1180 = vmatprep.subr.mxu0 0.0
    %1181 = vmatpush1.msra.mxu0 0.0
    %1182 = vmatprep.subr.mxu0 0.0
    %1183 = vmatpush1.msra.mxu0 0.0
    %1184 = vmatprep.subr.mxu0 0.0
    %1185 = vmatpush1.msra.mxu0 0.0
    %1186 = vmatprep.subr.mxu0 0.0
    %1187 = vmatpush1.msra.mxu0 0.0
    %1188 = vmatprep.subr.mxu0 0.0
    %1189 = vmatpush1.msra.mxu0 0.0
    %1190 = vmatprep.subr.mxu0 0.0
    %1191 = vmatpush1.msra.mxu0 0.0
    %1192 = vmatprep.mubr.f32.mxu0 0.0
    %1193 = vmatmul.mubr.f32.gmra.mrb[0].mxu0 %v1123
    %v1194 = vpop.f32.mrb[0].mxu0
    %v1195 = vadd.f32 0.0, %v1194
    %v1196 = vpop.f32.mrb[0].mxu0
    %1197 = vdwg.mxu0
    %v1199 = vsel %vm225, %v689, 0
    %v1202 = vsel %vm229, %v81, 0
    %1204 = vmatprep.subr.mxu0 0.0
    %1205 = vmatpush1.msra.mxu0 %v1202
    %1206 = vmatprep.subr.mxu0 0.0
    %1207 = vmatpush1.msra.mxu0 0.0
    %1208 = vmatprep.subr.mxu0 0.0
    %1209 = vmatpush1.msra.mxu0 0.0
    %1210 = vmatprep.subr.mxu0 0.0
    %1211 = vmatpush1.msra.mxu0 0.0
    %1212 = vmatprep.subr.mxu0 0.0
    %1213 = vmatpush1.msra.mxu0 0.0
    %1214 = vmatprep.subr.mxu0 0.0
    %1215 = vmatpush1.msra.mxu0 0.0
    %1216 = vmatprep.subr.mxu0 0.0
    %1217 = vmatpush1.msra.mxu0 0.0
    %1218 = vmatprep.subr.mxu0 0.0
    %1219 = vmatpush1.msra.mxu0 0.0
    %1220 = vmatprep.subr.mxu0 0.0
    %1221 = vmatpush1.msra.mxu0 0.0
    %1222 = vmatprep.subr.mxu0 0.0
    %1223 = vmatpush1.msra.mxu0 0.0
    %1224 = vmatprep.subr.mxu0 0.0
    %1225 = vmatpush1.msra.mxu0 0.0
    %1226 = vmatprep.subr.mxu0 0.0
    %1227 = vmatpush1.msra.mxu0 0.0
    %1228 = vmatprep.subr.mxu0 0.0
    %1229 = vmatpush1.msra.mxu0 0.0
    %1230 = vmatprep.subr.mxu0 0.0
    %1231 = vmatpush1.msra.mxu0 0.0
    %1232 = vmatprep.subr.mxu0 0.0
    %1233 = vmatpush1.msra.mxu0 0.0
    %1234 = vmatprep.subr.mxu0 0.0
    %1235 = vmatpush1.msra.mxu0 0.0
    %1236 = vmatprep.subr.mxu0 0.0
    %1237 = vmatpush1.msra.mxu0 0.0
    %1238 = vmatprep.subr.mxu0 0.0
    %1239 = vmatpush1.msra.mxu0 0.0
    %1240 = vmatprep.subr.mxu0 0.0
    %1241 = vmatpush1.msra.mxu0 0.0
    %1242 = vmatprep.subr.mxu0 0.0
    %1243 = vmatpush1.msra.mxu0 0.0
    %1244 = vmatprep.subr.mxu0 0.0
    %1245 = vmatpush1.msra.mxu0 0.0
    %1246 = vmatprep.subr.mxu0 0.0
    %1247 = vmatpush1.msra.mxu0 0.0
    %1248 = vmatprep.subr.mxu0 0.0
    %1249 = vmatpush1.msra.mxu0 0.0
    %1250 = vmatprep.subr.mxu0 0.0
    %1251 = vmatpush1.msra.mxu0 0.0
    %1252 = vmatprep.subr.mxu0 0.0
    %1253 = vmatpush1.msra.mxu0 0.0
    %1254 = vmatprep.subr.mxu0 0.0
    %1255 = vmatpush1.msra.mxu0 0.0
    %1256 = vmatprep.subr.mxu0 0.0
    %1257 = vmatpush1.msra.mxu0 0.0
    %1258 = vmatprep.subr.mxu0 0.0
    %1259 = vmatpush1.msra.mxu0 0.0
    %1260 = vmatprep.subr.mxu0 0.0
    %1261 = vmatpush1.msra.mxu0 0.0
    %1262 = vmatprep.subr.mxu0 0.0
    %1263 = vmatpush1.msra.mxu0 0.0
    %1264 = vmatprep.subr.mxu0 0.0
    %1265 = vmatpush1.msra.mxu0 0.0
    %1266 = vmatprep.subr.mxu0 0.0
    %1267 = vmatpush1.msra.mxu0 0.0
    %1268 = vmatprep.mubr.f32.mxu0 0.0
    %1269 = vmatmul.mubr.f32.gmra.mrb[0].mxu0 %v1199
    %v1270 = vpop.f32.mrb[0].mxu0
    %v1271 = vadd.f32 %v1195, %v1270
    %v1272 = vpop.f32.mrb[0].mxu0
    %1273 = vdwg.mxu0
    %v1274 = vrot.slane %v79, 2
    %v1276 = vadd.f32 %v1271, %v1274
    %v1277 = vcombine.high %v117, %v117
    %1278 = vrot.lane.b32.xlu0 %v1277, 124
    %v1279 = vpop.permute.xlu0 %1278
    %v1281 = vadd.f32 %v78, %v1279
    %v1282 = vsel %vm122, %v1276, 0.0
    %1283 = vadd.xlane.f32.xlu0 %v1282
    %v1284 = vpop.xlane.xlu0 %1283
    %v1285 = vsel %vm126, %v1281, 0.0
    %1286 = vadd.xlane.f32.xlu0 %v1285
    %v1287 = vpop.xlane.xlu0 %1286
    %v1288 = vadd.f32 %v1284, %v1287
    %v1289 = vmul.f32 %v1288, 0.14285715
    %v1290 = vsub.f32 %v1276, %v1289
    %v1291 = vsub.f32 %v1281, %v1289
    %v1292 = vmul.f32 %v1290, %v1290
    %v1293 = vsel %vm122, %v1292, 0.0
    %1294 = vadd.xlane.f32.xlu0 %v1293
    %v1295 = vpop.xlane.xlu0 %1294
    %v1296 = vmul.f32 %v1291, %v1291
    %v1297 = vsel %vm126, %v1296, 0.0
    %1298 = vadd.xlane.f32.xlu0 %v1297
    %v1299 = vpop.xlane.xlu0 %1298
    %v1300 = vadd.f32 %v1295, %v1299
    %v1301 = vmul.f32 %v1300, 0.16666667
    %v1302 = vrsqrt.pop %v1301
    %v1303 = vmul.f32 %v1290, %v1302
    %v1304 = vmul.f32 %v1291, %v1302
    %v1306 = vsel %vm147, %v1304, 0
    %1308 = vmatprep.subr.mxu0 0.0
    %1309 = vmatpush1.msra.mxu0 %v153
    %1310 = vmatprep.subr.mxu0 0.0
    %1311 = vmatpush1.msra.mxu0 0.0
    %1312 = vmatprep.subr.mxu0 0.0
    %1313 = vmatpush1.msra.mxu0 0.0
    %1314 = vmatprep.subr.mxu0 0.0
    %1315 = vmatpush1.msra.mxu0 0.0
    %1316 = vmatprep.subr.mxu0 0.0
    %1317 = vmatpush1.msra.mxu0 0.0
    %1318 = vmatprep.subr.mxu0 0.0
    %1319 = vmatpush1.msra.mxu0 0.0
    %1320 = vmatprep.subr.mxu0 0.0
    %1321 = vmatpush1.msra.mxu0 0.0
    %1322 = vmatprep.subr.mxu0 0.0
    %1323 = vmatpush1.msra.mxu0 0.0
    %1324 = vmatprep.subr.mxu0 0.0
    %1325 = vmatpush1.msra.mxu0 0.0
    %1326 = vmatprep.subr.mxu0 0.0
    %1327 = vmatpush1.msra.mxu0 0.0
    %1328 = vmatprep.subr.mxu0 0.0
    %1329 = vmatpush1.msra.mxu0 0.0
    %1330 = vmatprep.subr.mxu0 0.0
    %1331 = vmatpush1.msra.mxu0 0.0
    %1332 = vmatprep.subr.mxu0 0.0
    %1333 = vmatpush1.msra.mxu0 0.0
    %1334 = vmatprep.subr.mxu0 0.0
    %1335 = vmatpush1.msra.mxu0 0.0
    %1336 = vmatprep.subr.mxu0 0.0
    %1337 = vmatpush1.msra.mxu0 0.0
    %1338 = vmatprep.subr.mxu0 0.0
    %1339 = vmatpush1.msra.mxu0 0.0
    %1340 = vmatprep.subr.mxu0 0.0
    %1341 = vmatpush1.msra.mxu0 0.0
    %1342 = vmatprep.subr.mxu0 0.0
    %1343 = vmatpush1.msra.mxu0 0.0
    %1344 = vmatprep.subr.mxu0 0.0
    %1345 = vmatpush1.msra.mxu0 0.0
    %1346 = vmatprep.subr.mxu0 0.0
    %1347 = vmatpush1.msra.mxu0 0.0
    %1348 = vmatprep.subr.mxu0 0.0
    %1349 = vmatpush1.msra.mxu0 0.0
    %1350 = vmatprep.subr.mxu0 0.0
    %1351 = vmatpush1.msra.mxu0 0.0
    %1352 = vmatprep.subr.mxu0 0.0
    %1353 = vmatpush1.msra.mxu0 0.0
    %1354 = vmatprep.subr.mxu0 0.0
    %1355 = vmatpush1.msra.mxu0 0.0
    %1356 = vmatprep.subr.mxu0 0.0
    %1357 = vmatpush1.msra.mxu0 0.0
    %1358 = vmatprep.subr.mxu0 0.0
    %1359 = vmatpush1.msra.mxu0 0.0
    %1360 = vmatprep.subr.mxu0 0.0
    %1361 = vmatpush1.msra.mxu0 0.0
    %1362 = vmatprep.subr.mxu0 0.0
    %1363 = vmatpush1.msra.mxu0 0.0
    %1364 = vmatprep.subr.mxu0 0.0
    %1365 = vmatpush1.msra.mxu0 0.0
    %1366 = vmatprep.subr.mxu0 0.0
    %1367 = vmatpush1.msra.mxu0 0.0
    %1368 = vmatprep.subr.mxu0 0.0
    %1369 = vmatpush1.msra.mxu0 0.0
    %1370 = vmatprep.subr.mxu0 0.0
    %1371 = vmatpush1.msra.mxu0 0.0
    %1372 = vmatprep.mubr.f32.mxu0 0.0
    %1373 = vmatmul.mubr.f32.gmra.mrb[0].mxu0 %v1306
    %v1374 = vpop.f32.mrb[0].mxu0
    %v1375 = vadd.f32 0.0, %v1374
    %v1376 = vpop.f32.mrb[0].mxu0
    %1377 = vdwg.mxu0
    %v1379 = vsel %vm225, %v1303, 0
    %1381 = vmatprep.subr.mxu0 0.0
    %1382 = vmatpush1.msra.mxu0 %v231
    %1383 = vmatprep.subr.mxu0 0.0
    %1384 = vmatpush1.msra.mxu0 0.0
    %1385 = vmatprep.subr.mxu0 0.0
    %1386 = vmatpush1.msra.mxu0 0.0
    %1387 = vmatprep.subr.mxu0 0.0
    %1388 = vmatpush1.msra.mxu0 0.0
    %1389 = vmatprep.subr.mxu0 0.0
    %1390 = vmatpush1.msra.mxu0 0.0
    %1391 = vmatprep.subr.mxu0 0.0
    %1392 = vmatpush1.msra.mxu0 0.0
    %1393 = vmatprep.subr.mxu0 0.0
    %1394 = vmatpush1.msra.mxu0 0.0
    %1395 = vmatprep.subr.mxu0 0.0
    %1396 = vmatpush1.msra.mxu0 0.0
    %1397 = vmatprep.subr.mxu0 0.0
    %1398 = vmatpush1.msra.mxu0 0.0
    %1399 = vmatprep.subr.mxu0 0.0
    %1400 = vmatpush1.msra.mxu0 0.0
    %1401 = vmatprep.subr.mxu0 0.0
    %1402 = vmatpush1.msra.mxu0 0.0
    %1403 = vmatprep.subr.mxu0 0.0
    %1404 = vmatpush1.msra.mxu0 0.0
    %1405 = vmatprep.subr.mxu0 0.0
    %1406 = vmatpush1.msra.mxu0 0.0
    %1407 = vmatprep.subr.mxu0 0.0
    %1408 = vmatpush1.msra.mxu0 0.0
    %1409 = vmatprep.subr.mxu0 0.0
    %1410 = vmatpush1.msra.mxu0 0.0
    %1411 = vmatprep.subr.mxu0 0.0
    %1412 = vmatpush1.msra.mxu0 0.0
    %1413 = vmatprep.subr.mxu0 0.0
    %1414 = vmatpush1.msra.mxu0 0.0
    %1415 = vmatprep.subr.mxu0 0.0
    %1416 = vmatpush1.msra.mxu0 0.0
    %1417 = vmatprep.subr.mxu0 0.0
    %1418 = vmatpush1.msra.mxu0 0.0
    %1419 = vmatprep.subr.mxu0 0.0
    %1420 = vmatpush1.msra.mxu0 0.0
    %1421 = vmatprep.subr.mxu0 0.0
    %1422 = vmatpush1.msra.mxu0 0.0
    %1423 = vmatprep.subr.mxu0 0.0
    %1424 = vmatpush1.msra.mxu0 0.0
    %1425 = vmatprep.subr.mxu0 0.0
    %1426 = vmatpush1.msra.mxu0 0.0
    %1427 = vmatprep.subr.mxu0 0.0
    %1428 = vmatpush1.msra.mxu0 0.0
    %1429 = vmatprep.subr.mxu0 0.0
    %1430 = vmatpush1.msra.mxu0 0.0
    %1431 = vmatprep.subr.mxu0 0.0
    %1432 = vmatpush1.msra.mxu0 0.0
    %1433 = vmatprep.subr.mxu0 0.0
    %1434 = vmatpush1.msra.mxu0 0.0
    %1435 = vmatprep.subr.mxu0 0.0
    %1436 = vmatpush1.msra.mxu0 0.0
    %1437 = vmatprep.subr.mxu0 0.0
    %1438 = vmatpush1.msra.mxu0 0.0
    %1439 = vmatprep.subr.mxu0 0.0
    %1440 = vmatpush1.msra.mxu0 0.0
    %1441 = vmatprep.subr.mxu0 0.0
    %1442 = vmatpush1.msra.mxu0 0.0
    %1443 = vmatprep.subr.mxu0 0.0
    %1444 = vmatpush1.msra.mxu0 0.0
    %1445 = vmatprep.mubr.f32.mxu0 0.0
    %1446 = vmatmul.mubr.f32.gmra.mrb[0].mxu0 %v1379
    %v1447 = vpop.f32.mrb[0].mxu0
    %v1448 = vadd.f32 %v1375, %v1447
    %v1449 = vpop.f32.mrb[0].mxu0
    %1450 = vdwg.mxu0
    %v1451 = vadd.f32 %v1448, %v88
    %v1452 = vmax.f32 %v1451, 0.0
    %v1454 = vsel %vm305, %v1452, 0
    %1456 = vmatprep.subr.mxu0 0.0
    %1457 = vmatpush1.msra.mxu0 %v89
    %1458 = vmatprep.subr.mxu0 0.0
    %1459 = vmatpush1.msra.mxu0 %v90
    %1460 = vmatprep.subr.mxu0 0.0
    %1461 = vmatpush1.msra.mxu0 %v91
    %1462 = vmatprep.subr.mxu0 0.0
    %1463 = vmatpush1.msra.mxu0 %v92
    %1464 = vmatprep.subr.mxu0 0.0
    %1465 = vmatpush1.msra.mxu0 0.0
    %1466 = vmatprep.subr.mxu0 0.0
    %1467 = vmatpush1.msra.mxu0 0.0
    %1468 = vmatprep.subr.mxu0 0.0
    %1469 = vmatpush1.msra.mxu0 0.0
    %1470 = vmatprep.subr.mxu0 0.0
    %1471 = vmatpush1.msra.mxu0 0.0
    %1472 = vmatprep.subr.mxu0 0.0
    %1473 = vmatpush1.msra.mxu0 0.0
    %1474 = vmatprep.subr.mxu0 0.0
    %1475 = vmatpush1.msra.mxu0 0.0
    %1476 = vmatprep.subr.mxu0 0.0
    %1477 = vmatpush1.msra.mxu0 0.0
    %1478 = vmatprep.subr.mxu0 0.0
    %1479 = vmatpush1.msra.mxu0 0.0
    %1480 = vmatprep.subr.mxu0 0.0
    %1481 = vmatpush1.msra.mxu0 0.0
    %1482 = vmatprep.subr.mxu0 0.0
    %1483 = vmatpush1.msra.mxu0 0.0
    %1484 = vmatprep.subr.mxu0 0.0
    %1485 = vmatpush1.msra.mxu0 0.0
    %1486 = vmatprep.subr.mxu0 0.0
    %1487 = vmatpush1.msra.mxu0 0.0
    %1488 = vmatprep.subr.mxu0 0.0
    %1489 = vmatpush1.msra.mxu0 0.0
    %1490 = vmatprep.subr.mxu0 0.0
    %1491 = vmatpush1.msra.mxu0 0.0
    %1492 = vmatprep.subr.mxu0 0.0
    %1493 = vmatpush1.msra.mxu0 0.0
    %1494 = vmatprep.subr.mxu0 0.0
    %1495 = vmatpush1.msra.mxu0 0.0
    %1496 = vmatprep.subr.mxu0 0.0
    %1497 = vmatpush1.msra.mxu0 0.0
    %1498 = vmatprep.subr.mxu0 0.0
    %1499 = vmatpush1.msra.mxu0 0.0
    %1500 = vmatprep.subr.mxu0 0.0
    %1501 = vmatpush1.msra.mxu0 0.0
    %1502 = vmatprep.subr.mxu0 0.0
    %1503 = vmatpush1.msra.mxu0 0.0
    %1504 = vmatprep.subr.mxu0 0.0
    %1505 = vmatpush1.msra.mxu0 0.0
    %1506 = vmatprep.subr.mxu0 0.0
    %1507 = vmatpush1.msra.mxu0 0.0
    %1508 = vmatprep.subr.mxu0 0.0
    %1509 = vmatpush1.msra.mxu0 0.0
    %1510 = vmatprep.subr.mxu0 0.0
    %1511 = vmatpush1.msra.mxu0 0.0
    %1512 = vmatprep.subr.mxu0 0.0
    %1513 = vmatpush1.msra.mxu0 0.0
    %1514 = vmatprep.subr.mxu0 0.0
    %1515 = vmatpush1.msra.mxu0 0.0
    %1516 = vmatprep.subr.mxu0 0.0
    %1517 = vmatpush1.msra.mxu0 0.0
    %1518 = vmatprep.subr.mxu0 0.0
    %1519 = vmatpush1.msra.mxu0 0.0
    %1520 = vmatprep.mubr.f32.mxu0 0.0
    %1521 = vmatmul.mubr.f32.gmra.mrb[0].mxu0 %v1454
    %v1522 = vpop.f32.mrb[0].mxu0
    %v1523 = vadd.f32 %v93, %v1522
    %v1524 = vpop.f32.mrb[0].mxu0
    %1525 = vdwg.mxu0
    %v1526 = vmax.f32 %v1523, 0.0
    %v1528 = vsel %vm305, %v1526, 0
    %1530 = vmatprep.subr.mxu0 0.0
    %1531 = vmatpush1.msra.mxu0 %v94
    %1532 = vmatprep.subr.mxu0 0.0
    %1533 = vmatpush1.msra.mxu0 %v95
    %1534 = vmatprep.subr.mxu0 0.0
    %1535 = vmatpush1.msra.mxu0 %v96
    %1536 = vmatprep.subr.mxu0 0.0
    %1537 = vmatpush1.msra.mxu0 %v97
    %1538 = vmatprep.subr.mxu0 0.0
    %1539 = vmatpush1.msra.mxu0 0.0
    %1540 = vmatprep.subr.mxu0 0.0
    %1541 = vmatpush1.msra.mxu0 0.0
    %1542 = vmatprep.subr.mxu0 0.0
    %1543 = vmatpush1.msra.mxu0 0.0
    %1544 = vmatprep.subr.mxu0 0.0
    %1545 = vmatpush1.msra.mxu0 0.0
    %1546 = vmatprep.subr.mxu0 0.0
    %1547 = vmatpush1.msra.mxu0 0.0
    %1548 = vmatprep.subr.mxu0 0.0
    %1549 = vmatpush1.msra.mxu0 0.0
    %1550 = vmatprep.subr.mxu0 0.0
    %1551 = vmatpush1.msra.mxu0 0.0
    %1552 = vmatprep.subr.mxu0 0.0
    %1553 = vmatpush1.msra.mxu0 0.0
    %1554 = vmatprep.subr.mxu0 0.0
    %1555 = vmatpush1.msra.mxu0 0.0
    %1556 = vmatprep.subr.mxu0 0.0
    %1557 = vmatpush1.msra.mxu0 0.0
    %1558 = vmatprep.subr.mxu0 0.0
    %1559 = vmatpush1.msra.mxu0 0.0
    %1560 = vmatprep.subr.mxu0 0.0
    %1561 = vmatpush1.msra.mxu0 0.0
    %1562 = vmatprep.subr.mxu0 0.0
    %1563 = vmatpush1.msra.mxu0 0.0
    %1564 = vmatprep.subr.mxu0 0.0
    %1565 = vmatpush1.msra.mxu0 0.0
    %1566 = vmatprep.subr.mxu0 0.0
    %1567 = vmatpush1.msra.mxu0 0.0
    %1568 = vmatprep.subr.mxu0 0.0
    %1569 = vmatpush1.msra.mxu0 0.0
    %1570 = vmatprep.subr.mxu0 0.0
    %1571 = vmatpush1.msra.mxu0 0.0
    %1572 = vmatprep.subr.mxu0 0.0
    %1573 = vmatpush1.msra.mxu0 0.0
    %1574 = vmatprep.subr.mxu0 0.0
    %1575 = vmatpush1.msra.mxu0 0.0
    %1576 = vmatprep.subr.mxu0 0.0
    %1577 = vmatpush1.msra.mxu0 0.0
    %1578 = vmatprep.subr.mxu0 0.0
    %1579 = vmatpush1.msra.mxu0 0.0
    %1580 = vmatprep.subr.mxu0 0.0
    %1581 = vmatpush1.msra.mxu0 0.0
    %1582 = vmatprep.subr.mxu0 0.0
    %1583 = vmatpush1.msra.mxu0 0.0
    %1584 = vmatprep.subr.mxu0 0.0
    %1585 = vmatpush1.msra.mxu0 0.0
    %1586 = vmatprep.subr.mxu0 0.0
    %1587 = vmatpush1.msra.mxu0 0.0
    %1588 = vmatprep.subr.mxu0 0.0
    %1589 = vmatpush1.msra.mxu0 0.0
    %1590 = vmatprep.subr.mxu0 0.0
    %1591 = vmatpush1.msra.mxu0 0.0
    %1592 = vmatprep.subr.mxu0 0.0
    %1593 = vmatpush1.msra.mxu0 0.0
    %1594 = vmatprep.mubr.f32.mxu0 0.0
    %1595 = vmatmul.mubr.f32.gmra.mrb[0].mxu0 %v1528
    %v1596 = vpop.f32.mrb[0].mxu0
    %v1597 = vadd.f32 0.0, %v1596
    %v1598 = vpop.f32.mrb[0].mxu0
    %1599 = vdwg.mxu0
    %v1600 = vmax.f32 %v1597, -10.0
    %v1601 = vmin.f32 %v1600, 10.0
    %1602 = vmatprep.subr.mxu0 0.0
    %1603 = vmatpush1.msra.mxu0 %v98
    %1604 = vmatprep.subr.mxu0 0.0
    %1605 = vmatpush1.msra.mxu0 %v99
    %1606 = vmatprep.subr.mxu0 0.0
    %1607 = vmatpush1.msra.mxu0 %v100
    %1608 = vmatprep.subr.mxu0 0.0
    %1609 = vmatpush1.msra.mxu0 %v101
    %1610 = vmatprep.subr.mxu0 0.0
    %1611 = vmatpush1.msra.mxu0 0.0
    %1612 = vmatprep.subr.mxu0 0.0
    %1613 = vmatpush1.msra.mxu0 0.0
    %1614 = vmatprep.subr.mxu0 0.0
    %1615 = vmatpush1.msra.mxu0 0.0
    %1616 = vmatprep.subr.mxu0 0.0
    %1617 = vmatpush1.msra.mxu0 0.0
    %1618 = vmatprep.subr.mxu0 0.0
    %1619 = vmatpush1.msra.mxu0 0.0
    %1620 = vmatprep.subr.mxu0 0.0
    %1621 = vmatpush1.msra.mxu0 0.0
    %1622 = vmatprep.subr.mxu0 0.0
    %1623 = vmatpush1.msra.mxu0 0.0
    %1624 = vmatprep.subr.mxu0 0.0
    %1625 = vmatpush1.msra.mxu0 0.0
    %1626 = vmatprep.subr.mxu0 0.0
    %1627 = vmatpush1.msra.mxu0 0.0
    %1628 = vmatprep.subr.mxu0 0.0
    %1629 = vmatpush1.msra.mxu0 0.0
    %1630 = vmatprep.subr.mxu0 0.0
    %1631 = vmatpush1.msra.mxu0 0.0
    %1632 = vmatprep.subr.mxu0 0.0
    %1633 = vmatpush1.msra.mxu0 0.0
    %1634 = vmatprep.subr.mxu0 0.0
    %1635 = vmatpush1.msra.mxu0 0.0
    %1636 = vmatprep.subr.mxu0 0.0
    %1637 = vmatpush1.msra.mxu0 0.0
    %1638 = vmatprep.subr.mxu0 0.0
    %1639 = vmatpush1.msra.mxu0 0.0
    %1640 = vmatprep.subr.mxu0 0.0
    %1641 = vmatpush1.msra.mxu0 0.0
    %1642 = vmatprep.subr.mxu0 0.0
    %1643 = vmatpush1.msra.mxu0 0.0
    %1644 = vmatprep.subr.mxu0 0.0
    %1645 = vmatpush1.msra.mxu0 0.0
    %1646 = vmatprep.subr.mxu0 0.0
    %1647 = vmatpush1.msra.mxu0 0.0
    %1648 = vmatprep.subr.mxu0 0.0
    %1649 = vmatpush1.msra.mxu0 0.0
    %1650 = vmatprep.subr.mxu0 0.0
    %1651 = vmatpush1.msra.mxu0 0.0
    %1652 = vmatprep.subr.mxu0 0.0
    %1653 = vmatpush1.msra.mxu0 0.0
    %1654 = vmatprep.subr.mxu0 0.0
    %1655 = vmatpush1.msra.mxu0 0.0
    %1656 = vmatprep.subr.mxu0 0.0
    %1657 = vmatpush1.msra.mxu0 0.0
    %1658 = vmatprep.subr.mxu0 0.0
    %1659 = vmatpush1.msra.mxu0 0.0
    %1660 = vmatprep.subr.mxu0 0.0
    %1661 = vmatpush1.msra.mxu0 0.0
    %1662 = vmatprep.subr.mxu0 0.0
    %1663 = vmatpush1.msra.mxu0 0.0
    %1664 = vmatprep.subr.mxu0 0.0
    %1665 = vmatpush1.msra.mxu0 0.0
    %1666 = vmatprep.mubr.f32.mxu0 0.0
    %1667 = vmatmul.mubr.f32.gmra.mrb[0].mxu0 %v1528
    %v1668 = vpop.f32.mrb[0].mxu0
    %v1669 = vadd.f32 0.0, %v1668
    %v1670 = vpop.f32.mrb[0].mxu0
    %1671 = vdwg.mxu0
    %v1672 = vmax.f32 %v1669, -10.0
    %v1673 = vmin.f32 %v1672, 10.0
    %v1674 = vmul.f32 %v1601, 1.442695
    %v1675 = vpow.pop %v1674
    %1677 = vrot.lane.b32.xlu0 %v1675, 4
    %v1678 = vpop.permute.xlu0 %1677
    %v1680 = vmul.f32 %v1271, %v1678
    %1682 = vrot.lane.b32.xlu0 %v1673, 4
    %v1683 = vpop.permute.xlu0 %1682
    %v1685 = vadd.f32 %v1680, %v1683
    %v1686 = vand.u32 2147483647, %v1601
    %v1687 = vadd.f32 %v1686, 1e-09
    %v1688 = vlog2.pop %v1687
    %v1689 = vmul.f32 %v1688, 0.6931472
    %v1690 = vsel %vm122, %v1689, 0.0
    %1691 = vadd.xlane.f32.xlu0 %v1690
    %v1692 = vpop.xlane.xlu0 %1691
    %v1693 = vmul.f32 %v1692, 0.25
    %v1694 = vadd.f32 %v1119, %v1693
    %1696 = vrot.lane.b32.xlu0 %v1685, 124
    %v1697 = vpop.permute.xlu0 %1696
    %v1698 = vsel %vm225, %v1697, 0
    %v1701 = vsel %vm229, %v85, 0
    %1703 = vmatprep.subr.mxu0 0.0
    %1704 = vmatpush1.msra.mxu0 %v1701
    %1705 = vmatprep.subr.mxu0 0.0
    %1706 = vmatpush1.msra.mxu0 0.0
    %1707 = vmatprep.subr.mxu0 0.0
    %1708 = vmatpush1.msra.mxu0 0.0
    %1709 = vmatprep.subr.mxu0 0.0
    %1710 = vmatpush1.msra.mxu0 0.0
    %1711 = vmatprep.subr.mxu0 0.0
    %1712 = vmatpush1.msra.mxu0 0.0
    %1713 = vmatprep.subr.mxu0 0.0
    %1714 = vmatpush1.msra.mxu0 0.0
    %1715 = vmatprep.subr.mxu0 0.0
    %1716 = vmatpush1.msra.mxu0 0.0
    %1717 = vmatprep.subr.mxu0 0.0
    %1718 = vmatpush1.msra.mxu0 0.0
    %1719 = vmatprep.subr.mxu0 0.0
    %1720 = vmatpush1.msra.mxu0 0.0
    %1721 = vmatprep.subr.mxu0 0.0
    %1722 = vmatpush1.msra.mxu0 0.0
    %1723 = vmatprep.subr.mxu0 0.0
    %1724 = vmatpush1.msra.mxu0 0.0
    %1725 = vmatprep.subr.mxu0 0.0
    %1726 = vmatpush1.msra.mxu0 0.0
    %1727 = vmatprep.subr.mxu0 0.0
    %1728 = vmatpush1.msra.mxu0 0.0
    %1729 = vmatprep.subr.mxu0 0.0
    %1730 = vmatpush1.msra.mxu0 0.0
    %1731 = vmatprep.subr.mxu0 0.0
    %1732 = vmatpush1.msra.mxu0 0.0
    %1733 = vmatprep.subr.mxu0 0.0
    %1734 = vmatpush1.msra.mxu0 0.0
    %1735 = vmatprep.subr.mxu0 0.0
    %1736 = vmatpush1.msra.mxu0 0.0
    %1737 = vmatprep.subr.mxu0 0.0
    %1738 = vmatpush1.msra.mxu0 0.0
    %1739 = vmatprep.subr.mxu0 0.0
    %1740 = vmatpush1.msra.mxu0 0.0
    %1741 = vmatprep.subr.mxu0 0.0
    %1742 = vmatpush1.msra.mxu0 0.0
    %1743 = vmatprep.subr.mxu0 0.0
    %1744 = vmatpush1.msra.mxu0 0.0
    %1745 = vmatprep.subr.mxu0 0.0
    %1746 = vmatpush1.msra.mxu0 0.0
    %1747 = vmatprep.subr.mxu0 0.0
    %1748 = vmatpush1.msra.mxu0 0.0
    %1749 = vmatprep.subr.mxu0 0.0
    %1750 = vmatpush1.msra.mxu0 0.0
    %1751 = vmatprep.subr.mxu0 0.0
    %1752 = vmatpush1.msra.mxu0 0.0
    %1753 = vmatprep.subr.mxu0 0.0
    %1754 = vmatpush1.msra.mxu0 0.0
    %1755 = vmatprep.subr.mxu0 0.0
    %1756 = vmatpush1.msra.mxu0 0.0
    %1757 = vmatprep.subr.mxu0 0.0
    %1758 = vmatpush1.msra.mxu0 0.0
    %1759 = vmatprep.subr.mxu0 0.0
    %1760 = vmatpush1.msra.mxu0 0.0
    %1761 = vmatprep.subr.mxu0 0.0
    %1762 = vmatpush1.msra.mxu0 0.0
    %1763 = vmatprep.subr.mxu0 0.0
    %1764 = vmatpush1.msra.mxu0 0.0
    %1765 = vmatprep.subr.mxu0 0.0
    %1766 = vmatpush1.msra.mxu0 0.0
    %1767 = vmatprep.mubr.f32.mxu0 0.0
    %1768 = vmatmul.mubr.f32.gmra.mrb[0].mxu0 %v1698
    %v1769 = vpop.f32.mrb[0].mxu0
    %v1770 = vadd.f32 0.0, %v1769
    %v1771 = vpop.f32.mrb[0].mxu0
    %1772 = vdwg.mxu0
    %v1774 = vsel %vm225, %v1271, 0
    %v1777 = vsel %vm229, %v82, 0
    %1779 = vmatprep.subr.mxu0 0.0
    %1780 = vmatpush1.msra.mxu0 %v1777
    %1781 = vmatprep.subr.mxu0 0.0
    %1782 = vmatpush1.msra.mxu0 0.0
    %1783 = vmatprep.subr.mxu0 0.0
    %1784 = vmatpush1.msra.mxu0 0.0
    %1785 = vmatprep.subr.mxu0 0.0
    %1786 = vmatpush1.msra.mxu0 0.0
    %1787 = vmatprep.subr.mxu0 0.0
    %1788 = vmatpush1.msra.mxu0 0.0
    %1789 = vmatprep.subr.mxu0 0.0
    %1790 = vmatpush1.msra.mxu0 0.0
    %1791 = vmatprep.subr.mxu0 0.0
    %1792 = vmatpush1.msra.mxu0 0.0
    %1793 = vmatprep.subr.mxu0 0.0
    %1794 = vmatpush1.msra.mxu0 0.0
    %1795 = vmatprep.subr.mxu0 0.0
    %1796 = vmatpush1.msra.mxu0 0.0
    %1797 = vmatprep.subr.mxu0 0.0
    %1798 = vmatpush1.msra.mxu0 0.0
    %1799 = vmatprep.subr.mxu0 0.0
    %1800 = vmatpush1.msra.mxu0 0.0
    %1801 = vmatprep.subr.mxu0 0.0
    %1802 = vmatpush1.msra.mxu0 0.0
    %1803 = vmatprep.subr.mxu0 0.0
    %1804 = vmatpush1.msra.mxu0 0.0
    %1805 = vmatprep.subr.mxu0 0.0
    %1806 = vmatpush1.msra.mxu0 0.0
    %1807 = vmatprep.subr.mxu0 0.0
    %1808 = vmatpush1.msra.mxu0 0.0
    %1809 = vmatprep.subr.mxu0 0.0
    %1810 = vmatpush1.msra.mxu0 0.0
    %1811 = vmatprep.subr.mxu0 0.0
    %1812 = vmatpush1.msra.mxu0 0.0
    %1813 = vmatprep.subr.mxu0 0.0
    %1814 = vmatpush1.msra.mxu0 0.0
    %1815 = vmatprep.subr.mxu0 0.0
    %1816 = vmatpush1.msra.mxu0 0.0
    %1817 = vmatprep.subr.mxu0 0.0
    %1818 = vmatpush1.msra.mxu0 0.0
    %1819 = vmatprep.subr.mxu0 0.0
    %1820 = vmatpush1.msra.mxu0 0.0
    %1821 = vmatprep.subr.mxu0 0.0
    %1822 = vmatpush1.msra.mxu0 0.0
    %1823 = vmatprep.subr.mxu0 0.0
    %1824 = vmatpush1.msra.mxu0 0.0
    %1825 = vmatprep.subr.mxu0 0.0
    %1826 = vmatpush1.msra.mxu0 0.0
    %1827 = vmatprep.subr.mxu0 0.0
    %1828 = vmatpush1.msra.mxu0 0.0
    %1829 = vmatprep.subr.mxu0 0.0
    %1830 = vmatpush1.msra.mxu0 0.0
    %1831 = vmatprep.subr.mxu0 0.0
    %1832 = vmatpush1.msra.mxu0 0.0
    %1833 = vmatprep.subr.mxu0 0.0
    %1834 = vmatpush1.msra.mxu0 0.0
    %1835 = vmatprep.subr.mxu0 0.0
    %1836 = vmatpush1.msra.mxu0 0.0
    %1837 = vmatprep.subr.mxu0 0.0
    %1838 = vmatpush1.msra.mxu0 0.0
    %1839 = vmatprep.subr.mxu0 0.0
    %1840 = vmatpush1.msra.mxu0 0.0
    %1841 = vmatprep.subr.mxu0 0.0
    %1842 = vmatpush1.msra.mxu0 0.0
    %1843 = vmatprep.mubr.f32.mxu0 0.0
    %1844 = vmatmul.mubr.f32.gmra.mrb[0].mxu0 %v1774
    %v1845 = vpop.f32.mrb[0].mxu0
    %v1846 = vadd.f32 %v1770, %v1845
    %v1847 = vpop.f32.mrb[0].mxu0
    %1848 = vdwg.mxu0
    %vm1849 = vcmask 57344
    %1850 = vst.msk [vmem:[#allocation7] sm:$0x1] %vm1849, %v1846
    %vm1851 = vcmask 0
    %1852 = vst.msk [vmem:[#allocation8] sm:$0x1] %vm1851, %v1694
    // Predicated region
    $region62: #{_lambda_.1} parent=1 // pred_check
      _
    $region63: #{_lambda_.1} parent=1 // pred_check_branch
      %1854 = sbr.rel (0) target = $region65
    $region64: #{_lambda_.1} parent=1 // pred_region
      %s1856 = ssub.s32 16, 16
      %1857 = vsyncadd [#allocation4], %s1856
      %s1859 = sshll.u32 [#allocation7], 4
      %s1860 = int_to_ptr.vmem [resolvable:$true] %s1859
      %1862 = dma.vmem_to_hbm [thread:$0]  %s1860, 16, %s13, [#allocation4]
    $region65: #{_lambda_.1} parent=1 // pred_fallthru
      _
    // Predicated region
    $region66: #{_lambda_.1} parent=1 // pred_check
      _
    $region67: #{_lambda_.1} parent=1 // pred_check_branch
      %1864 = sbr.rel (0) target = $region69
    $region68: #{_lambda_.1} parent=1 // pred_region
      %s1866 = ssub.s32 16, 16
      %1867 = vsyncadd [#allocation9], %s1866
      %s1869 = sshll.u32 [#allocation8], 4
      %s1870 = int_to_ptr.vmem [resolvable:$true] %s1869
      %1872 = dma.vmem_to_hbm [thread:$0]  %s1870, 16, %s14, [#allocation9]
    $region69: #{_lambda_.1} parent=1 // pred_fallthru
      _
    // Predicated region
    $region70: #{_lambda_.1} parent=1 // pred_check
      _
    $region71: #{_lambda_.1} parent=1 // pred_check_branch
      %1874 = sbr.rel (0) target = $region73
    $region72: #{_lambda_.1} parent=1 // pred_region
      %1875 = dma.done [#allocation4], 16
    $region73: #{_lambda_.1} parent=1 // pred_fallthru
      _
    // Predicated region
    $region74: #{_lambda_.1} parent=1 // pred_check
      _
    $region75: #{_lambda_.1} parent=1 // pred_check_branch
      %1877 = sbr.rel (0) target = $region77
    $region76: #{_lambda_.1} parent=1 // pred_region
      %1878 = dma.done [#allocation9], 16
    $region77: #{_lambda_.1} parent=1 // pred_fallthru
      _
    %1879 = vsyncpa [#allocation3], 1
    %1880 = vsyncpa [#allocation6], 1
    %1881 = vsyncpa [#allocation4], 1
    %1882 = vsyncpa [#allocation9], 1

</llo_original>
